<compile_context>
chip_gen: v5e
topology: v5e:2x2
jax: 0.10.0
libtpu: 0.0.40
codegen_flags: <defaults>
</compile_context>

<pallas_src>
import jax
import jax.numpy as jnp
import numpy as np
from jax.experimental import pallas as pl
from jax.experimental.pallas import tpu as pltpu


# ----------------------------------------------------------------------------- kernel


def make_mlp_kernel(n_linear: int, final_norm: bool, eps: float = 1e-5):
    def kernel(*refs):
        # refs: x, (W^T, b_col) * (n_linear-1), (W_last, b_row),
        #       [gamma_row, beta_row if final_norm], out
        x_ref = refs[0]
        out_ref = refs[-1]
        idx = 1

        # ---- Layers 0 .. n_linear-2: batch-on-lanes ([features, tb]) --------
        # The [tb, in] -> [in, tb] flip is folded into the first dot's RHS; the
        # MXU's N dimension is the batch tile (lane-dense), operands are bf16
        # with f32 accumulation.
        h = x_ref[...].T                                    # bf16 [in_dim, tb]
        for _ in range(n_linear - 1):
            wt_ref, b_ref = refs[idx], refs[idx + 1]
            idx += 2
            z = (
                jnp.dot(wt_ref[...], h, preferred_element_type=jnp.float32)
                + b_ref[...]                                # [d_out, 1] sublane bcast
            )
            # ReLU in f32 (portable to v5e), then keep the activation bf16-
            # resident between layers (halves vreg footprint, operand is ready).
            h = jnp.maximum(z, 0.0).astype(jnp.bfloat16)    # bf16 [d_out, tb]

        # ---- Last linear in natural layout -> [tb, out_dim] directly --------
        w_ref, b_ref = refs[idx], refs[idx + 1]
        idx += 2
        z = (
            jnp.dot(h.T, w_ref[...], preferred_element_type=jnp.float32)
            + b_ref[...]                                    # [1, d_out] row bcast
        )                                                   # f32 [tb, out_dim]

        if final_norm:  # nn.LayerNorm(out_dim) over the (lane) feature axis
            g_ref, beta_ref = refs[idx], refs[idx + 1]
            mean = jnp.mean(z, axis=-1, keepdims=True)      # [tb, 1]
            c = z - mean
            var = jnp.mean(c * c, axis=-1, keepdims=True)   # two-pass variance
            z = c * jax.lax.rsqrt(var + eps) * g_ref[...] + beta_ref[...]

        out_ref[...] = z.astype(out_ref.dtype)

    return kernel


# ------------------------------------------------------------------- param packing


def prepare_mlp_params(weights, biases, gamma=None, beta=None):
    """One-time packing of the MLP parameters into kernel layout.

    weights[l]: [d_in_l, d_out_l]  (i.e. `x @ W` convention == PyTorch weight^T)
    biases[l]:  [d_out_l]
    All layers except the last are stored as W^T [d_out, d_in] bf16 with a
    [d_out, 1] bias column; the last layer stays natural [d_in, d_out] bf16
    with a [1, d_out] bias row; gamma/beta become [1, d_out] rows.
    """
    n = len(weights)
    params = []
    for l in range(n - 1):
        params.append(jnp.transpose(weights[l]).astype(jnp.bfloat16))        # [do, di]
        params.append(jnp.reshape(biases[l], (-1, 1)).astype(jnp.float32))   # [do, 1]
    params.append(weights[-1].astype(jnp.bfloat16))                          # [di, do]
    params.append(jnp.reshape(biases[-1], (1, -1)).astype(jnp.float32))      # [1, do]
    if gamma is not None:
        params.append(jnp.reshape(gamma, (1, -1)).astype(jnp.float32))       # [1, do]
        params.append(jnp.reshape(beta, (1, -1)).astype(jnp.float32))        # [1, do]
    return tuple(params)


# ------------------------------------------------------------------------- wrapper


def _tensorcores_per_chip():
    # v7x has 2 TensorCores per chip; v5e/v6e have 1.
    try:
        kind = jax.devices()[0].device_kind.lower()
        if "v7" in kind:
            return 2
    except Exception:
        pass
    return 1


def _pick_tb(B, n_tc, cap=512):
    """Largest lane-dense batch tile under the vreg ceiling, with at least one
    grid step per TensorCore on multi-core chips (v7x)."""
    tb = 128 * ((B + 128 * n_tc - 1) // (128 * n_tc))
    return int(max(128, min(cap, tb)))


def mlp_forward(x, params, *, final_norm, tb=None, eps=1e-5):
    """x: [B, in_dim] (ideally already bf16).  params: output of prepare_mlp_params."""
    B, in_dim = x.shape
    if x.dtype != jnp.bfloat16:
        # MXU operands are bf16 anyway; callers should pre-cast to skip this op.
        x = x.astype(jnp.bfloat16)
    out_dim = params[-1].shape[-1]
    n_linear = (len(params) - (2 if final_norm else 0)) // 2
    if tb is None:
        tb = _pick_tb(B, _tensorcores_per_chip())

    kernel = make_mlp_kernel(n_linear, final_norm, eps)

    # Params are tiny and have constant block indices -> Pallas keeps them
    # resident in VMEM and does not re-DMA across grid steps.
    const_spec = lambda a: pl.BlockSpec(a.shape, lambda i: (0, 0))
    in_specs = [pl.BlockSpec((tb, in_dim), lambda i: (i, 0))]
    in_specs += [const_spec(p) for p in params]

    return pl.pallas_call(
        kernel,
        out_shape=jax.ShapeDtypeStruct((B, out_dim), jnp.float32),
        grid_spec=pltpu.PrefetchScalarGridSpec(
            num_scalar_prefetch=0,
            grid=(pl.cdiv(B, tb),),
            in_specs=in_specs,
            out_specs=pl.BlockSpec((tb, out_dim), lambda i: (i, 0)),
        ),
        compiler_params=pltpu.CompilerParams(dimension_semantics=("parallel",)),
    )(x, *params)


# ----------------------------------------------------------------------- reference


def mlp_reference(x, weights, biases, gamma=None, beta=None, eps=1e-5):
    """Pure-JAX reference emulating the kernel numerics (bf16 matmul operands,
    f32 accumulation, f32 elementwise, two-pass LayerNorm)."""
    h = x.astype(jnp.float32)
    n = len(weights)
    for l, (w, b) in enumerate(zip(weights, biases)):
        h = (
            jnp.dot(
                h.astype(jnp.bfloat16),
                w.astype(jnp.bfloat16),
                preferred_element_type=jnp.float32,
            )
            + b
        )
        if l < n - 1:
            h = jnp.maximum(h, 0.0)
    if gamma is not None:
        mean = jnp.mean(h, axis=-1, keepdims=True)
        var = jnp.mean(jnp.square(h - mean), axis=-1, keepdims=True)
        h = (h - mean) * jax.lax.rsqrt(var + eps) * gamma + beta
    return h


# ---------------------------------------------------------------------------- demo


if __name__ == "__main__":
    # Module config: MLP(in_dim=32, out_dim=32, hidden_dim=64,
    #                    n_hidden_layers=1, final_norm=True)
    in_dim, hidden_dim, out_dim = 32, 64, 32
    n_hidden_layers = 1
    B = 512  # 1 grid step on v5e/v6e (tb=512), 2 parallel steps on v7x (tb=256)

    key = jax.random.PRNGKey(0)
    keys = jax.random.split(key, 16)

    dims = [in_dim] + [hidden_dim] * (n_hidden_layers + 1) + [out_dim]
    weights, biases = [], []
    for l in range(len(dims) - 1):
        d_in, d_out = dims[l], dims[l + 1]
        # PyTorch-Linear-style init (uniform +/- 1/sqrt(d_in)); weight stored
        # pre-transposed as [d_in, d_out] (the `x @ W` convention).
        bound = 1.0 / np.sqrt(d_in)
        w = jax.random.uniform(keys[2 * l], (d_in, d_out), jnp.float32, -bound, bound)
        b = jax.random.uniform(keys[2 * l + 1], (d_out,), jnp.float32, -bound, bound)
        weights.append(w)
        biases.append(b)
    gamma = jnp.ones((out_dim,), jnp.float32)   # nn.LayerNorm default weight
    beta = jnp.zeros((out_dim,), jnp.float32)   # nn.LayerNorm default bias

    x = jax.random.normal(keys[-1], (B, in_dim), jnp.float32)

    # One-time parameter packing (hoisted out of the per-call path).
    params = prepare_mlp_params(weights, biases, gamma, beta)
    params = jax.block_until_ready(params)
    x_bf16 = jax.block_until_ready(x.astype(jnp.bfloat16))

    fwd = jax.jit(mlp_forward, static_argnames=("final_norm", "tb", "eps"))
    out = fwd(x_bf16, params, final_norm=True)
    out = jax.block_until_ready(out)

    ref = mlp_reference(x, weights, biases, gamma, beta)
    np.testing.assert_allclose(np.asarray(out), np.asarray(ref), atol=2e-3, rtol=2e-3)

    print("KERNEL_OK")
</pallas_src>

<mosaic_0001>
module attributes {stable_mosaic.version = 11 : i64} {
  func.func @kernel(%arg0: i32, %arg1: memref<512x32xbf16, #tpu.memory_space<vmem>>, %arg2: memref<64x32xbf16, #tpu.memory_space<vmem>>, %arg3: memref<64x1xf32, #tpu.memory_space<vmem>>, %arg4: memref<64x64xbf16, #tpu.memory_space<vmem>>, %arg5: memref<64x1xf32, #tpu.memory_space<vmem>>, %arg6: memref<64x32xbf16, #tpu.memory_space<vmem>>, %arg7: memref<1x32xf32, #tpu.memory_space<vmem>>, %arg8: memref<1x32xf32, #tpu.memory_space<vmem>>, %arg9: memref<1x32xf32, #tpu.memory_space<vmem>>, %arg10: memref<512x32xf32, #tpu.memory_space<vmem>>) attributes {dimension_semantics = [#tpu.dimension_semantics<parallel>], iteration_bounds = array<i64: 1>, scalar_prefetch = 0 : i64, scratch_operands = 0 : i64, tpu.core_type = #tpu.core_type<tc>, window_params = [{transform_indices = @transform_0, window_bounds = array<i64: 512, 32>}, {pipeline_mode = #tpu.pipeline_mode<synchronous>, transform_indices = @transform_1, window_bounds = array<i64: 64, 32>}, {pipeline_mode = #tpu.pipeline_mode<synchronous>, transform_indices = @transform_2, window_bounds = array<i64: 64, 1>}, {pipeline_mode = #tpu.pipeline_mode<synchronous>, transform_indices = @transform_3, window_bounds = array<i64: 64, 64>}, {pipeline_mode = #tpu.pipeline_mode<synchronous>, transform_indices = @transform_4, window_bounds = array<i64: 64, 1>}, {pipeline_mode = #tpu.pipeline_mode<synchronous>, transform_indices = @transform_5, window_bounds = array<i64: 64, 32>}, {pipeline_mode = #tpu.pipeline_mode<synchronous>, transform_indices = @transform_6, window_bounds = array<i64: 1, 32>}, {pipeline_mode = #tpu.pipeline_mode<synchronous>, transform_indices = @transform_7, window_bounds = array<i64: 1, 32>}, {pipeline_mode = #tpu.pipeline_mode<synchronous>, transform_indices = @transform_8, window_bounds = array<i64: 1, 32>}, {transform_indices = @transform_9, window_bounds = array<i64: 512, 32>}]} {
    %c0 = arith.constant 0 : index
    %c0_0 = arith.constant 0 : index
    %0 = vector.load %arg1[%c0, %c0_0] : memref<512x32xbf16, #tpu.memory_space<vmem>>, vector<512x32xbf16>
    %1 = tpu.transpose %0, [1, 0] : vector<512x32xbf16> -> vector<32x512xbf16>
    %c0_1 = arith.constant 0 : index
    %c0_2 = arith.constant 0 : index
    %2 = vector.load %arg2[%c0_1, %c0_2] : memref<64x32xbf16, #tpu.memory_space<vmem>>, vector<64x32xbf16>
    %cst = arith.constant dense<0.000000e+00> : vector<64x512xf32>
    %3 = tpu.matmul %2, %1, %cst {dimension_numbers = #tpu.dot_dimension_numbers<[1], [0], [0], [1], [0, 0, 1, 1], [], []>} : vector<64x32xbf16>, vector<32x512xbf16>, vector<64x512xf32> -> vector<64x512xf32>
    %c0_3 = arith.constant 0 : index
    %c0_4 = arith.constant 0 : index
    %4 = vector.load %arg3[%c0_3, %c0_4] : memref<64x1xf32, #tpu.memory_space<vmem>>, vector<64x1xf32>
    %5 = vector.broadcast %4 : vector<64x1xf32> to vector<64x512xf32>
    %6 = arith.addf %3, %5 : vector<64x512xf32>
    %cst_5 = arith.constant 0.000000e+00 : f32
    %7 = vector.broadcast %cst_5 : f32 to vector<64x512xf32>
    %8 = arith.maximumf %6, %7 : vector<64x512xf32>
    %9 = arith.truncf %8 : vector<64x512xf32> to vector<64x512xbf16>
    %c0_6 = arith.constant 0 : index
    %c0_7 = arith.constant 0 : index
    %10 = vector.load %arg4[%c0_6, %c0_7] : memref<64x64xbf16, #tpu.memory_space<vmem>>, vector<64x64xbf16>
    %cst_8 = arith.constant dense<0.000000e+00> : vector<64x512xf32>
    %11 = tpu.matmul %10, %9, %cst_8 {dimension_numbers = #tpu.dot_dimension_numbers<[1], [0], [0], [1], [0, 0, 1, 1], [], []>} : vector<64x64xbf16>, vector<64x512xbf16>, vector<64x512xf32> -> vector<64x512xf32>
    %c0_9 = arith.constant 0 : index
    %c0_10 = arith.constant 0 : index
    %12 = vector.load %arg5[%c0_9, %c0_10] : memref<64x1xf32, #tpu.memory_space<vmem>>, vector<64x1xf32>
    %13 = vector.broadcast %12 : vector<64x1xf32> to vector<64x512xf32>
    %14 = arith.addf %11, %13 : vector<64x512xf32>
    %cst_11 = arith.constant 0.000000e+00 : f32
    %15 = vector.broadcast %cst_11 : f32 to vector<64x512xf32>
    %16 = arith.maximumf %14, %15 : vector<64x512xf32>
    %17 = arith.truncf %16 : vector<64x512xf32> to vector<64x512xbf16>
    %18 = tpu.transpose %17, [1, 0] : vector<64x512xbf16> -> vector<512x64xbf16>
    %c0_12 = arith.constant 0 : index
    %c0_13 = arith.constant 0 : index
    %19 = vector.load %arg6[%c0_12, %c0_13] : memref<64x32xbf16, #tpu.memory_space<vmem>>, vector<64x32xbf16>
    %cst_14 = arith.constant dense<0.000000e+00> : vector<512x32xf32>
    %20 = tpu.matmul %18, %19, %cst_14 {dimension_numbers = #tpu.dot_dimension_numbers<[1], [0], [0], [1], [0, 0, 1, 1], [], []>} : vector<512x64xbf16>, vector<64x32xbf16>, vector<512x32xf32> -> vector<512x32xf32>
    %c0_15 = arith.constant 0 : index
    %c0_16 = arith.constant 0 : index
    %21 = vector.load %arg7[%c0_15, %c0_16] : memref<1x32xf32, #tpu.memory_space<vmem>>, vector<1x32xf32>
    %22 = vector.broadcast %21 : vector<1x32xf32> to vector<512x32xf32>
    %23 = arith.addf %20, %22 : vector<512x32xf32>
    %cst_17 = arith.constant dense<0.000000e+00> : vector<512xf32>
    %24 = vector.multi_reduction <add>, %23, %cst_17 [1] : vector<512x32xf32> to vector<512xf32>
    %25 = vector.shape_cast %24 : vector<512xf32> to vector<512x1xf32>
    %cst_18 = arith.constant 3.200000e+01 : f32
    %26 = vector.broadcast %cst_18 : f32 to vector<512x1xf32>
    %27 = arith.divf %25, %26 : vector<512x1xf32>
    %28 = vector.broadcast %27 : vector<512x1xf32> to vector<512x32xf32>
    %29 = arith.subf %23, %28 : vector<512x32xf32>
    %30 = arith.mulf %29, %29 : vector<512x32xf32>
    %cst_19 = arith.constant dense<0.000000e+00> : vector<512xf32>
    %31 = vector.multi_reduction <add>, %30, %cst_19 [1] : vector<512x32xf32> to vector<512xf32>
    %32 = vector.shape_cast %31 : vector<512xf32> to vector<512x1xf32>
    %cst_20 = arith.constant 3.200000e+01 : f32
    %33 = vector.broadcast %cst_20 : f32 to vector<512x1xf32>
    %34 = arith.divf %32, %33 : vector<512x1xf32>
    %cst_21 = arith.constant 9.99999974E-6 : f32
    %35 = vector.broadcast %cst_21 : f32 to vector<512x1xf32>
    %36 = arith.addf %34, %35 : vector<512x1xf32>
    %37 = math.rsqrt %36 : vector<512x1xf32>
    %38 = vector.broadcast %37 : vector<512x1xf32> to vector<512x32xf32>
    %39 = arith.mulf %29, %38 : vector<512x32xf32>
    %c0_22 = arith.constant 0 : index
    %c0_23 = arith.constant 0 : index
    %40 = vector.load %arg8[%c0_22, %c0_23] : memref<1x32xf32, #tpu.memory_space<vmem>>, vector<1x32xf32>
    %41 = vector.broadcast %40 : vector<1x32xf32> to vector<512x32xf32>
    %42 = arith.mulf %39, %41 : vector<512x32xf32>
    %c0_24 = arith.constant 0 : index
    %c0_25 = arith.constant 0 : index
    %43 = vector.load %arg9[%c0_24, %c0_25] : memref<1x32xf32, #tpu.memory_space<vmem>>, vector<1x32xf32>
    %44 = vector.broadcast %43 : vector<1x32xf32> to vector<512x32xf32>
    %45 = arith.addf %42, %44 : vector<512x32xf32>
    %c0_26 = arith.constant 0 : index
    %c0_27 = arith.constant 0 : index
    %46 = vector.load %arg10[%c0_26, %c0_27] : memref<512x32xf32, #tpu.memory_space<vmem>>, vector<512x32xf32>
    tpu.vector_store %arg10[%c0_26, %c0_27], %45 {strides = array<i32>} : memref<512x32xf32, #tpu.memory_space<vmem>>, vector<512x32xf32>,
    return
  }
  func.func @transform_0(%arg0: i32) -> (i32, i32) {
    %c0_i32 = arith.constant 0 : i32
    %c0_i32_0 = arith.constant 0 : i32
    return %arg0, %c0_i32 : i32, i32
  }
  func.func @transform_1(%arg0: i32) -> (i32, i32) {
    %c0_i32 = arith.constant 0 : i32
    %c0_i32_0 = arith.constant 0 : i32
    %c0_i32_1 = arith.constant 0 : i32
    return %c0_i32, %c0_i32_0 : i32, i32
  }
  func.func @transform_2(%arg0: i32) -> (i32, i32) {
    %c0_i32 = arith.constant 0 : i32
    %c0_i32_0 = arith.constant 0 : i32
    %c0_i32_1 = arith.constant 0 : i32
    return %c0_i32, %c0_i32_0 : i32, i32
  }
  func.func @transform_3(%arg0: i32) -> (i32, i32) {
    %c0_i32 = arith.constant 0 : i32
    %c0_i32_0 = arith.constant 0 : i32
    %c0_i32_1 = arith.constant 0 : i32
    return %c0_i32, %c0_i32_0 : i32, i32
  }
  func.func @transform_4(%arg0: i32) -> (i32, i32) {
    %c0_i32 = arith.constant 0 : i32
    %c0_i32_0 = arith.constant 0 : i32
    %c0_i32_1 = arith.constant 0 : i32
    return %c0_i32, %c0_i32_0 : i32, i32
  }
  func.func @transform_5(%arg0: i32) -> (i32, i32) {
    %c0_i32 = arith.constant 0 : i32
    %c0_i32_0 = arith.constant 0 : i32
    %c0_i32_1 = arith.constant 0 : i32
    return %c0_i32, %c0_i32_0 : i32, i32
  }
  func.func @transform_6(%arg0: i32) -> (i32, i32) {
    %c0_i32 = arith.constant 0 : i32
    %c0_i32_0 = arith.constant 0 : i32
    %c0_i32_1 = arith.constant 0 : i32
    return %c0_i32, %c0_i32_0 : i32, i32
  }
  func.func @transform_7(%arg0: i32) -> (i32, i32) {
    %c0_i32 = arith.constant 0 : i32
    %c0_i32_0 = arith.constant 0 : i32
    %c0_i32_1 = arith.constant 0 : i32
    return %c0_i32, %c0_i32_0 : i32, i32
  }
  func.func @transform_8(%arg0: i32) -> (i32, i32) {
    %c0_i32 = arith.constant 0 : i32
    %c0_i32_0 = arith.constant 0 : i32
    %c0_i32_1 = arith.constant 0 : i32
    return %c0_i32, %c0_i32_0 : i32, i32
  }
  func.func @transform_9(%arg0: i32) -> (i32, i32) {
    %c0_i32 = arith.constant 0 : i32
    %c0_i32_0 = arith.constant 0 : i32
    return %arg0, %c0_i32 : i32, i32
  }
}

</mosaic_0001>

<llo_original>
// kernel: mlp_forward.1
$region0: #{mlp_forward.1}
  #allocation0 [shape = 'u32[]', space=smem, size = 0x4, offset = 0x4, fixed_abs, tag = 'smem constant byte address 0x4 - core index']
  #allocation1 [shape = 'u32[72,128]{1,0:T(1,128)}', space=vmem, size = 0x9000, scoped, tag = 'internal scratch']
  %s0 = inlined_call_operand.vmem [shape: bf16[512,32], index: 0, kind: input, shape index: {}]
  %s1 = inlined_call_operand.vmem [shape: bf16[64,32], index: 1, kind: input, shape index: {}]
  %s2 = inlined_call_operand.vmem [shape: f32[64,1], index: 2, kind: input, shape index: {}]
  %s3 = inlined_call_operand.vmem [shape: bf16[64,64], index: 3, kind: input, shape index: {}]
  %s4 = inlined_call_operand.vmem [shape: f32[64,1], index: 4, kind: input, shape index: {}]
  %s5 = inlined_call_operand.vmem [shape: bf16[64,32], index: 5, kind: input, shape index: {}]
  %s6 = inlined_call_operand.vmem [shape: f32[1,32], index: 6, kind: input, shape index: {}]
  %s7 = inlined_call_operand.vmem [shape: f32[1,32], index: 7, kind: input, shape index: {}]
  %s8 = inlined_call_operand.vmem [shape: f32[1,32], index: 8, kind: input, shape index: {}]
  %s9 = inlined_call_operand.vmem [shape: f32[512,32], index: 9, kind: output, shape index: {}]
  %s10 = sld [smem:[#allocation0]]
  $region46: #{mlp_forward.1} parent=0
    _
  %s12 = ssub.s32 1, %s10
  %s13 = scalar_select 0, %s12, %s10
  // Predicated region
  $region2: #{mlp_forward.1} parent=0 // pred_check
    _
  $region3: #{mlp_forward.1} parent=0 // pred_check_branch
    %15 = sbr.rel (0) target = $region5
  $region4: #{mlp_forward.1} parent=0 // pred_region
    _
  $region5: #{mlp_forward.1} parent=0 // pred_fallthru
    _
  // Predicated region
  $region6: #{mlp_forward.1} parent=0 // pred_check
    _
  $region7: #{mlp_forward.1} parent=0 // pred_check_branch
    %17 = sbr.rel (0) target = $region9
  $region8: #{mlp_forward.1} parent=0 // pred_region
    _
  $region9: #{mlp_forward.1} parent=0 // pred_fallthru
    _
  // Predicated region
  $region10: #{mlp_forward.1} parent=0 // pred_check
    _
  $region11: #{mlp_forward.1} parent=0 // pred_check_branch
    %19 = sbr.rel (0) target = $region13
  $region12: #{mlp_forward.1} parent=0 // pred_region
    _
  $region13: #{mlp_forward.1} parent=0 // pred_fallthru
    _
  // Predicated region
  $region14: #{mlp_forward.1} parent=0 // pred_check
    _
  $region15: #{mlp_forward.1} parent=0 // pred_check_branch
    %21 = sbr.rel (0) target = $region17
  $region16: #{mlp_forward.1} parent=0 // pred_region
    _
  $region17: #{mlp_forward.1} parent=0 // pred_fallthru
    _
  // Predicated region
  $region18: #{mlp_forward.1} parent=0 // pred_check
    _
  $region19: #{mlp_forward.1} parent=0 // pred_check_branch
    %23 = sbr.rel (0) target = $region21
  $region20: #{mlp_forward.1} parent=0 // pred_region
    _
  $region21: #{mlp_forward.1} parent=0 // pred_fallthru
    _
  // Predicated region
  $region22: #{mlp_forward.1} parent=0 // pred_check
    _
  $region23: #{mlp_forward.1} parent=0 // pred_check_branch
    %25 = sbr.rel (0) target = $region25
  $region24: #{mlp_forward.1} parent=0 // pred_region
    _
  $region25: #{mlp_forward.1} parent=0 // pred_fallthru
    _
  // Predicated region
  $region26: #{mlp_forward.1} parent=0 // pred_check
    _
  $region27: #{mlp_forward.1} parent=0 // pred_check_branch
    %27 = sbr.rel (0) target = $region29
  $region28: #{mlp_forward.1} parent=0 // pred_region
    _
  $region29: #{mlp_forward.1} parent=0 // pred_fallthru
    _
  // Predicated region
  $region30: #{mlp_forward.1} parent=0 // pred_check
    _
  $region31: #{mlp_forward.1} parent=0 // pred_check_branch
    %29 = sbr.rel (0) target = $region33
  $region32: #{mlp_forward.1} parent=0 // pred_region
    _
  $region33: #{mlp_forward.1} parent=0 // pred_fallthru
    _
  // Predicated region
  $region34: #{mlp_forward.1} parent=0 // pred_check
    _
  $region35: #{mlp_forward.1} parent=0 // pred_check_branch
    %31 = sbr.rel (0) target = $region37
  $region36: #{mlp_forward.1} parent=0 // pred_region
    _
  $region37: #{mlp_forward.1} parent=0 // pred_fallthru
    _
  %v33 = vld [vmem:[%s0] sm:$0xf]
  %v34 = vld [vmem:[%s0 + $0x4] sm:$0xf]
  %v35 = vld [vmem:[%s0 + $0x8] sm:$0xf]
  %v36 = vld [vmem:[%s0 + $0xc] sm:$0xf]
  %v37 = vld [vmem:[%s0 + $0x10] sm:$0xf]
  %v38 = vld [vmem:[%s0 + $0x14] sm:$0xf]
  %v39 = vld [vmem:[%s0 + $0x18] sm:$0xf]
  %v40 = vld [vmem:[%s0 + $0x1c] sm:$0xf]
  %v41 = vld [vmem:[%s0 + $0x20] sm:$0xf]
  %v42 = vld [vmem:[%s0 + $0x24] sm:$0xf]
  %v43 = vld [vmem:[%s0 + $0x28] sm:$0xf]
  %v44 = vld [vmem:[%s0 + $0x2c] sm:$0xf]
  %v45 = vld [vmem:[%s0 + $0x30] sm:$0xf]
  %v46 = vld [vmem:[%s0 + $0x34] sm:$0xf]
  %v47 = vld [vmem:[%s0 + $0x38] sm:$0xf]
  %v48 = vld [vmem:[%s0 + $0x3c] sm:$0xf]
  %v49 = vld [vmem:[%s0 + $0x40] sm:$0xf]
  %v50 = vld [vmem:[%s0 + $0x44] sm:$0xf]
  %v51 = vld [vmem:[%s0 + $0x48] sm:$0xf]
  %v52 = vld [vmem:[%s0 + $0x4c] sm:$0xf]
  %v53 = vld [vmem:[%s0 + $0x50] sm:$0xf]
  %v54 = vld [vmem:[%s0 + $0x54] sm:$0xf]
  %v55 = vld [vmem:[%s0 + $0x58] sm:$0xf]
  %v56 = vld [vmem:[%s0 + $0x5c] sm:$0xf]
  %v57 = vld [vmem:[%s0 + $0x60] sm:$0xf]
  %v58 = vld [vmem:[%s0 + $0x64] sm:$0xf]
  %v59 = vld [vmem:[%s0 + $0x68] sm:$0xf]
  %v60 = vld [vmem:[%s0 + $0x6c] sm:$0xf]
  %v61 = vld [vmem:[%s0 + $0x70] sm:$0xf]
  %v62 = vld [vmem:[%s0 + $0x74] sm:$0xf]
  %v63 = vld [vmem:[%s0 + $0x78] sm:$0xf]
  %v64 = vld [vmem:[%s0 + $0x7c] sm:$0xf]
  %v65 = vld [vmem:[%s0 + $0x80] sm:$0xf]
  %v66 = vld [vmem:[%s0 + $0x84] sm:$0xf]
  %v67 = vld [vmem:[%s0 + $0x88] sm:$0xf]
  %v68 = vld [vmem:[%s0 + $0x8c] sm:$0xf]
  %v69 = vld [vmem:[%s0 + $0x90] sm:$0xf]
  %v70 = vld [vmem:[%s0 + $0x94] sm:$0xf]
  %v71 = vld [vmem:[%s0 + $0x98] sm:$0xf]
  %v72 = vld [vmem:[%s0 + $0x9c] sm:$0xf]
  %v73 = vld [vmem:[%s0 + $0xa0] sm:$0xf]
  %v74 = vld [vmem:[%s0 + $0xa4] sm:$0xf]
  %v75 = vld [vmem:[%s0 + $0xa8] sm:$0xf]
  %v76 = vld [vmem:[%s0 + $0xac] sm:$0xf]
  %v77 = vld [vmem:[%s0 + $0xb0] sm:$0xf]
  %v78 = vld [vmem:[%s0 + $0xb4] sm:$0xf]
  %v79 = vld [vmem:[%s0 + $0xb8] sm:$0xf]
  %v80 = vld [vmem:[%s0 + $0xbc] sm:$0xf]
  %v81 = vld [vmem:[%s0 + $0xc0] sm:$0xf]
  %v82 = vld [vmem:[%s0 + $0xc4] sm:$0xf]
  %v83 = vld [vmem:[%s0 + $0xc8] sm:$0xf]
  %v84 = vld [vmem:[%s0 + $0xcc] sm:$0xf]
  %v85 = vld [vmem:[%s0 + $0xd0] sm:$0xf]
  %v86 = vld [vmem:[%s0 + $0xd4] sm:$0xf]
  %v87 = vld [vmem:[%s0 + $0xd8] sm:$0xf]
  %v88 = vld [vmem:[%s0 + $0xdc] sm:$0xf]
  %v89 = vld [vmem:[%s0 + $0xe0] sm:$0xf]
  %v90 = vld [vmem:[%s0 + $0xe4] sm:$0xf]
  %v91 = vld [vmem:[%s0 + $0xe8] sm:$0xf]
  %v92 = vld [vmem:[%s0 + $0xec] sm:$0xf]
  %v93 = vld [vmem:[%s0 + $0xf0] sm:$0xf]
  %v94 = vld [vmem:[%s0 + $0xf4] sm:$0xf]
  %v95 = vld [vmem:[%s0 + $0xf8] sm:$0xf]
  %v96 = vld [vmem:[%s0 + $0xfc] sm:$0xf]
  %v97 = vld [vmem:[%s1] sm:$0xf]
  %v98 = vld [vmem:[%s1 + $0x4] sm:$0xf]
  %v99 = vld [vmem:[%s1 + $0x8] sm:$0xf]
  %v100 = vld [vmem:[%s1 + $0xc] sm:$0xf]
  %v101 = vld [vmem:[%s1 + $0x10] sm:$0xf]
  %v102 = vld [vmem:[%s1 + $0x14] sm:$0xf]
  %v103 = vld [vmem:[%s1 + $0x18] sm:$0xf]
  %v104 = vld [vmem:[%s1 + $0x1c] sm:$0xf]
  %v105 = vld [vmem:[%s2] sm:$0xff]
  %v106 = vld [vmem:[%s2 + $0x8] sm:$0xff]
  %v107 = vld [vmem:[%s2 + $0x10] sm:$0xff]
  %v108 = vld [vmem:[%s2 + $0x18] sm:$0xff]
  %v109 = vld [vmem:[%s2 + $0x20] sm:$0xff]
  %v110 = vld [vmem:[%s2 + $0x28] sm:$0xff]
  %v111 = vld [vmem:[%s2 + $0x30] sm:$0xff]
  %v112 = vld [vmem:[%s2 + $0x38] sm:$0xff]
  %114 = vset.pattern.permute.xlu0 0
  %115 = vperm.xlu0 %114, %v105
  %v116 = vpop.permute.xlu0 %115
  %119 = vset.pattern.permute.xlu0 0
  %120 = vperm.xlu0 %119, %v106
  %v121 = vpop.permute.xlu0 %120
  %124 = vset.pattern.permute.xlu0 0
  %125 = vperm.xlu0 %124, %v107
  %v126 = vpop.permute.xlu0 %125
  %129 = vset.pattern.permute.xlu0 0
  %130 = vperm.xlu0 %129, %v108
  %v131 = vpop.permute.xlu0 %130
  %134 = vset.pattern.permute.xlu0 0
  %135 = vperm.xlu0 %134, %v109
  %v136 = vpop.permute.xlu0 %135
  %139 = vset.pattern.permute.xlu0 0
  %140 = vperm.xlu0 %139, %v110
  %v141 = vpop.permute.xlu0 %140
  %144 = vset.pattern.permute.xlu0 0
  %145 = vperm.xlu0 %144, %v111
  %v146 = vpop.permute.xlu0 %145
  %149 = vset.pattern.permute.xlu0 0
  %150 = vperm.xlu0 %149, %v112
  %v151 = vpop.permute.xlu0 %150
  %v161 = vunpack.c.l.b16 %v97
  %v162 = vunpack.c.l.b16 %v98
  %v163 = vunpack.c.l.b16 %v99
  %v164 = vunpack.c.l.b16 %v100
  %v165 = vunpack.c.l.b16 %v101
  %v166 = vunpack.c.l.b16 %v102
  %v167 = vunpack.c.l.b16 %v103
  %v168 = vunpack.c.l.b16 %v104
  %v169 = vpack.c.b16 %v162, %v161
  %v170 = vpack.c.b16 %v164, %v163
  %v171 = vpack.c.b16 %v166, %v165
  %v172 = vpack.c.b16 %v168, %v167
  %v237 = vunpack.c.l.b16 %v33
  %v238 = vunpack.c.l.b16 %v34
  %v239 = vunpack.c.l.b16 %v35
  %v240 = vunpack.c.l.b16 %v36
  %v241 = vunpack.c.l.b16 %v37
  %v242 = vunpack.c.l.b16 %v38
  %v243 = vunpack.c.l.b16 %v39
  %v244 = vunpack.c.l.b16 %v40
  %v245 = vunpack.c.l.b16 %v41
  %v246 = vunpack.c.l.b16 %v42
  %v247 = vunpack.c.l.b16 %v43
  %v248 = vunpack.c.l.b16 %v44
  %v249 = vunpack.c.l.b16 %v45
  %v250 = vunpack.c.l.b16 %v46
  %v251 = vunpack.c.l.b16 %v47
  %v252 = vunpack.c.l.b16 %v48
  %v253 = vunpack.c.l.b16 %v49
  %v254 = vunpack.c.l.b16 %v50
  %v255 = vunpack.c.l.b16 %v51
  %v256 = vunpack.c.l.b16 %v52
  %v257 = vunpack.c.l.b16 %v53
  %v258 = vunpack.c.l.b16 %v54
  %v259 = vunpack.c.l.b16 %v55
  %v260 = vunpack.c.l.b16 %v56
  %v261 = vunpack.c.l.b16 %v57
  %v262 = vunpack.c.l.b16 %v58
  %v263 = vunpack.c.l.b16 %v59
  %v264 = vunpack.c.l.b16 %v60
  %v265 = vunpack.c.l.b16 %v61
  %v266 = vunpack.c.l.b16 %v62
  %v267 = vunpack.c.l.b16 %v63
  %v268 = vunpack.c.l.b16 %v64
  %v269 = vunpack.c.l.b16 %v65
  %v270 = vunpack.c.l.b16 %v66
  %v271 = vunpack.c.l.b16 %v67
  %v272 = vunpack.c.l.b16 %v68
  %v273 = vunpack.c.l.b16 %v69
  %v274 = vunpack.c.l.b16 %v70
  %v275 = vunpack.c.l.b16 %v71
  %v276 = vunpack.c.l.b16 %v72
  %v277 = vunpack.c.l.b16 %v73
  %v278 = vunpack.c.l.b16 %v74
  %v279 = vunpack.c.l.b16 %v75
  %v280 = vunpack.c.l.b16 %v76
  %v281 = vunpack.c.l.b16 %v77
  %v282 = vunpack.c.l.b16 %v78
  %v283 = vunpack.c.l.b16 %v79
  %v284 = vunpack.c.l.b16 %v80
  %v285 = vunpack.c.l.b16 %v81
  %v286 = vunpack.c.l.b16 %v82
  %v287 = vunpack.c.l.b16 %v83
  %v288 = vunpack.c.l.b16 %v84
  %v289 = vunpack.c.l.b16 %v85
  %v290 = vunpack.c.l.b16 %v86
  %v291 = vunpack.c.l.b16 %v87
  %v292 = vunpack.c.l.b16 %v88
  %v293 = vunpack.c.l.b16 %v89
  %v294 = vunpack.c.l.b16 %v90
  %v295 = vunpack.c.l.b16 %v91
  %v296 = vunpack.c.l.b16 %v92
  %v297 = vunpack.c.l.b16 %v93
  %v298 = vunpack.c.l.b16 %v94
  %v299 = vunpack.c.l.b16 %v95
  %v300 = vunpack.c.l.b16 %v96
  %v301 = vpack.c.b16 %v238, %v237
  %v302 = vpack.c.b16 %v240, %v239
  %v303 = vpack.c.b16 %v242, %v241
  %v304 = vpack.c.b16 %v244, %v243
  %v305 = vpack.c.b16 %v246, %v245
  %v306 = vpack.c.b16 %v248, %v247
  %v307 = vpack.c.b16 %v250, %v249
  %v308 = vpack.c.b16 %v252, %v251
  %v309 = vpack.c.b16 %v254, %v253
  %v310 = vpack.c.b16 %v256, %v255
  %v311 = vpack.c.b16 %v258, %v257
  %v312 = vpack.c.b16 %v260, %v259
  %v313 = vpack.c.b16 %v262, %v261
  %v314 = vpack.c.b16 %v264, %v263
  %v315 = vpack.c.b16 %v266, %v265
  %v316 = vpack.c.b16 %v268, %v267
  %v317 = vpack.c.b16 %v270, %v269
  %v318 = vpack.c.b16 %v272, %v271
  %v319 = vpack.c.b16 %v274, %v273
  %v320 = vpack.c.b16 %v276, %v275
  %v321 = vpack.c.b16 %v278, %v277
  %v322 = vpack.c.b16 %v280, %v279
  %v323 = vpack.c.b16 %v282, %v281
  %v324 = vpack.c.b16 %v284, %v283
  %v325 = vpack.c.b16 %v286, %v285
  %v326 = vpack.c.b16 %v288, %v287
  %v327 = vpack.c.b16 %v290, %v289
  %v328 = vpack.c.b16 %v292, %v291
  %v329 = vpack.c.b16 %v294, %v293
  %v330 = vpack.c.b16 %v296, %v295
  %v331 = vpack.c.b16 %v298, %v297
  %v332 = vpack.c.b16 %v300, %v299
  %vm333 = vcmask 261120
  %v335 = vsel %vm333, %v169, 0
  %v338 = vsel %vm333, %v170, 0
  %v341 = vsel %vm333, %v171, 0
  %v344 = vsel %vm333, %v172, 0
  %v347 = vsel %vm333, %v301, 0
  %v350 = vsel %vm333, %v302, 0
  %v353 = vsel %vm333, %v303, 0
  %v356 = vsel %vm333, %v304, 0
  %v359 = vsel %vm333, %v305, 0
  %v362 = vsel %vm333, %v306, 0
  %v365 = vsel %vm333, %v307, 0
  %v368 = vsel %vm333, %v308, 0
  %v371 = vsel %vm333, %v309, 0
  %v374 = vsel %vm333, %v310, 0
  %v377 = vsel %vm333, %v311, 0
  %v380 = vsel %vm333, %v312, 0
  %v383 = vsel %vm333, %v313, 0
  %v386 = vsel %vm333, %v314, 0
  %v389 = vsel %vm333, %v315, 0
  %v392 = vsel %vm333, %v316, 0
  %v395 = vsel %vm333, %v317, 0
  %v398 = vsel %vm333, %v318, 0
  %v401 = vsel %vm333, %v319, 0
  %v404 = vsel %vm333, %v320, 0
  %v407 = vsel %vm333, %v321, 0
  %v410 = vsel %vm333, %v322, 0
  %v413 = vsel %vm333, %v323, 0
  %v416 = vsel %vm333, %v324, 0
  %v419 = vsel %vm333, %v325, 0
  %v422 = vsel %vm333, %v326, 0
  %v425 = vsel %vm333, %v327, 0
  %v428 = vsel %vm333, %v328, 0
  %v431 = vsel %vm333, %v329, 0
  %v434 = vsel %vm333, %v330, 0
  %v437 = vsel %vm333, %v331, 0
  %v440 = vsel %vm333, %v332, 0
  %442 = vmatpush.bf16.xpose.msra.mxu0 %v368
  %443 = vmatpush.bf16.xpose.msra.mxu0 %v365
  %444 = vmatpush.bf16.xpose.msra.mxu0 %v362
  %445 = vmatpush.bf16.xpose.msra.mxu0 %v359
  %446 = vmatpush.bf16.xpose.msra.mxu0 %v356
  %447 = vmatpush.bf16.xpose.msra.mxu0 %v353
  %448 = vmatpush.bf16.xpose.msra.mxu0 %v350
  %449 = vmatpush.bf16.xpose.msra.mxu0 %v347
  %450 = vmatmul.bf16.gmra.mxu0 %v335
  %v451 = vpop.f32.mrf.mxu0
  %v452 = vadd.f32 %v116, %v451
  %v453 = vpop.f32.mrf.mxu0
  %v454 = vadd.f32 %v121, %v453
  %455 = vmatmul.bf16.gmra.mxu0 %v338
  %v456 = vpop.f32.mrf.mxu0
  %v457 = vadd.f32 %v126, %v456
  %v458 = vpop.f32.mrf.mxu0
  %v459 = vadd.f32 %v131, %v458
  %460 = vmatmul.bf16.gmra.mxu0 %v341
  %v461 = vpop.f32.mrf.mxu0
  %v462 = vadd.f32 %v136, %v461
  %v463 = vpop.f32.mrf.mxu0
  %v464 = vadd.f32 %v141, %v463
  %465 = vmatmul.bf16.gmra.mxu0 %v344
  %v466 = vpop.f32.mrf.mxu0
  %v467 = vadd.f32 %v146, %v466
  %v468 = vpop.f32.mrf.mxu0
  %v469 = vadd.f32 %v151, %v468
  %470 = vdwg.mxu0
  %471 = vmatpush.bf16.xpose.msra.mxu0 %v392
  %472 = vmatpush.bf16.xpose.msra.mxu0 %v389
  %473 = vmatpush.bf16.xpose.msra.mxu0 %v386
  %474 = vmatpush.bf16.xpose.msra.mxu0 %v383
  %475 = vmatpush.bf16.xpose.msra.mxu0 %v380
  %476 = vmatpush.bf16.xpose.msra.mxu0 %v377
  %477 = vmatpush.bf16.xpose.msra.mxu0 %v374
  %478 = vmatpush.bf16.xpose.msra.mxu0 %v371
  %479 = vmatmul.bf16.gmra.mxu0 %v335
  %v480 = vpop.f32.mrf.mxu0
  %v481 = vadd.f32 %v116, %v480
  %v482 = vpop.f32.mrf.mxu0
  %v483 = vadd.f32 %v121, %v482
  %484 = vmatmul.bf16.gmra.mxu0 %v338
  %v485 = vpop.f32.mrf.mxu0
  %v486 = vadd.f32 %v126, %v485
  %v487 = vpop.f32.mrf.mxu0
  %v488 = vadd.f32 %v131, %v487
  %489 = vmatmul.bf16.gmra.mxu0 %v341
  %v490 = vpop.f32.mrf.mxu0
  %v491 = vadd.f32 %v136, %v490
  %v492 = vpop.f32.mrf.mxu0
  %v493 = vadd.f32 %v141, %v492
  %494 = vmatmul.bf16.gmra.mxu0 %v344
  %v495 = vpop.f32.mrf.mxu0
  %v496 = vadd.f32 %v146, %v495
  %v497 = vpop.f32.mrf.mxu0
  %v498 = vadd.f32 %v151, %v497
  %499 = vdwg.mxu0
  %500 = vmatpush.bf16.xpose.msra.mxu0 %v416
  %501 = vmatpush.bf16.xpose.msra.mxu0 %v413
  %502 = vmatpush.bf16.xpose.msra.mxu0 %v410
  %503 = vmatpush.bf16.xpose.msra.mxu0 %v407
  %504 = vmatpush.bf16.xpose.msra.mxu0 %v404
  %505 = vmatpush.bf16.xpose.msra.mxu0 %v401
  %506 = vmatpush.bf16.xpose.msra.mxu0 %v398
  %507 = vmatpush.bf16.xpose.msra.mxu0 %v395
  %508 = vmatmul.bf16.gmra.mxu0 %v335
  %v509 = vpop.f32.mrf.mxu0
  %v510 = vadd.f32 %v116, %v509
  %v511 = vpop.f32.mrf.mxu0
  %v512 = vadd.f32 %v121, %v511
  %513 = vmatmul.bf16.gmra.mxu0 %v338
  %v514 = vpop.f32.mrf.mxu0
  %v515 = vadd.f32 %v126, %v514
  %v516 = vpop.f32.mrf.mxu0
  %v517 = vadd.f32 %v131, %v516
  %518 = vmatmul.bf16.gmra.mxu0 %v341
  %v519 = vpop.f32.mrf.mxu0
  %v520 = vadd.f32 %v136, %v519
  %v521 = vpop.f32.mrf.mxu0
  %v522 = vadd.f32 %v141, %v521
  %523 = vmatmul.bf16.gmra.mxu0 %v344
  %v524 = vpop.f32.mrf.mxu0
  %v525 = vadd.f32 %v146, %v524
  %v526 = vpop.f32.mrf.mxu0
  %v527 = vadd.f32 %v151, %v526
  %528 = vdwg.mxu0
  %529 = vmatpush.bf16.xpose.msra.mxu0 %v440
  %530 = vmatpush.bf16.xpose.msra.mxu0 %v437
  %531 = vmatpush.bf16.xpose.msra.mxu0 %v434
  %532 = vmatpush.bf16.xpose.msra.mxu0 %v431
  %533 = vmatpush.bf16.xpose.msra.mxu0 %v428
  %534 = vmatpush.bf16.xpose.msra.mxu0 %v425
  %535 = vmatpush.bf16.xpose.msra.mxu0 %v422
  %536 = vmatpush.bf16.xpose.msra.mxu0 %v419
  %537 = vmatmul.bf16.gmra.mxu0 %v335
  %v538 = vpop.f32.mrf.mxu0
  %v539 = vadd.f32 %v116, %v538
  %v540 = vpop.f32.mrf.mxu0
  %v541 = vadd.f32 %v121, %v540
  %542 = vmatmul.bf16.gmra.mxu0 %v338
  %v543 = vpop.f32.mrf.mxu0
  %v544 = vadd.f32 %v126, %v543
  %v545 = vpop.f32.mrf.mxu0
  %v546 = vadd.f32 %v131, %v545
  %547 = vmatmul.bf16.gmra.mxu0 %v341
  %v548 = vpop.f32.mrf.mxu0
  %v549 = vadd.f32 %v136, %v548
  %v550 = vpop.f32.mrf.mxu0
  %v551 = vadd.f32 %v141, %v550
  %552 = vmatmul.bf16.gmra.mxu0 %v344
  %v553 = vpop.f32.mrf.mxu0
  %v554 = vadd.f32 %v146, %v553
  %v555 = vpop.f32.mrf.mxu0
  %v556 = vadd.f32 %v151, %v555
  %557 = vdwg.mxu0
  %v558 = vmax.f32 %v452, 0.0
  %v559 = vmax.f32 %v481, 0.0
  %v560 = vmax.f32 %v510, 0.0
  %v561 = vmax.f32 %v539, 0.0
  %v562 = vmax.f32 %v454, 0.0
  %v563 = vmax.f32 %v483, 0.0
  %v564 = vmax.f32 %v512, 0.0
  %v565 = vmax.f32 %v541, 0.0
  %v566 = vmax.f32 %v457, 0.0
  %v567 = vmax.f32 %v486, 0.0
  %v568 = vmax.f32 %v515, 0.0
  %v569 = vmax.f32 %v544, 0.0
  %v570 = vmax.f32 %v459, 0.0
  %v571 = vmax.f32 %v488, 0.0
  %v572 = vmax.f32 %v517, 0.0
  %v573 = vmax.f32 %v546, 0.0
  %v574 = vmax.f32 %v462, 0.0
  %v575 = vmax.f32 %v491, 0.0
  %v576 = vmax.f32 %v520, 0.0
  %v577 = vmax.f32 %v549, 0.0
  %v578 = vmax.f32 %v464, 0.0
  %v579 = vmax.f32 %v493, 0.0
  %v580 = vmax.f32 %v522, 0.0
  %v581 = vmax.f32 %v551, 0.0
  %v582 = vmax.f32 %v467, 0.0
  %v583 = vmax.f32 %v496, 0.0
  %v584 = vmax.f32 %v525, 0.0
  %v585 = vmax.f32 %v554, 0.0
  %v586 = vmax.f32 %v469, 0.0
  %v587 = vmax.f32 %v498, 0.0
  %v588 = vmax.f32 %v527, 0.0
  %v589 = vmax.f32 %v556, 0.0
  %v590 = vpack.c.bf16 %v562, %v558
  %v591 = vpack.c.bf16 %v563, %v559
  %v592 = vpack.c.bf16 %v564, %v560
  %v593 = vpack.c.bf16 %v565, %v561
  %v594 = vpack.c.bf16 %v570, %v566
  %v595 = vpack.c.bf16 %v571, %v567
  %v596 = vpack.c.bf16 %v572, %v568
  %v597 = vpack.c.bf16 %v573, %v569
  %v598 = vpack.c.bf16 %v578, %v574
  %v599 = vpack.c.bf16 %v579, %v575
  %v600 = vpack.c.bf16 %v580, %v576
  %v601 = vpack.c.bf16 %v581, %v577
  %v602 = vpack.c.bf16 %v586, %v582
  %v603 = vpack.c.bf16 %v587, %v583
  %v604 = vpack.c.bf16 %v588, %v584
  %v605 = vpack.c.bf16 %v589, %v585
  %v606 = vld [vmem:[%s3] sm:$0xf]
  %v607 = vld [vmem:[%s3 + $0x4] sm:$0xf]
  %v608 = vld [vmem:[%s3 + $0x8] sm:$0xf]
  %v609 = vld [vmem:[%s3 + $0xc] sm:$0xf]
  %v610 = vld [vmem:[%s3 + $0x10] sm:$0xf]
  %v611 = vld [vmem:[%s3 + $0x14] sm:$0xf]
  %v612 = vld [vmem:[%s3 + $0x18] sm:$0xf]
  %v613 = vld [vmem:[%s3 + $0x1c] sm:$0xf]
  %v614 = vld [vmem:[%s4] sm:$0xff]
  %v615 = vld [vmem:[%s4 + $0x8] sm:$0xff]
  %v616 = vld [vmem:[%s4 + $0x10] sm:$0xff]
  %v617 = vld [vmem:[%s4 + $0x18] sm:$0xff]
  %v618 = vld [vmem:[%s4 + $0x20] sm:$0xff]
  %v619 = vld [vmem:[%s4 + $0x28] sm:$0xff]
  %v620 = vld [vmem:[%s4 + $0x30] sm:$0xff]
  %v621 = vld [vmem:[%s4 + $0x38] sm:$0xff]
  %623 = vset.pattern.permute.xlu0 0
  %624 = vperm.xlu0 %623, %v614
  %v625 = vpop.permute.xlu0 %624
  %628 = vset.pattern.permute.xlu0 0
  %629 = vperm.xlu0 %628, %v615
  %v630 = vpop.permute.xlu0 %629
  %633 = vset.pattern.permute.xlu0 0
  %634 = vperm.xlu0 %633, %v616
  %v635 = vpop.permute.xlu0 %634
  %638 = vset.pattern.permute.xlu0 0
  %639 = vperm.xlu0 %638, %v617
  %v640 = vpop.permute.xlu0 %639
  %643 = vset.pattern.permute.xlu0 0
  %644 = vperm.xlu0 %643, %v618
  %v645 = vpop.permute.xlu0 %644
  %648 = vset.pattern.permute.xlu0 0
  %649 = vperm.xlu0 %648, %v619
  %v650 = vpop.permute.xlu0 %649
  %653 = vset.pattern.permute.xlu0 0
  %654 = vperm.xlu0 %653, %v620
  %v655 = vpop.permute.xlu0 %654
  %658 = vset.pattern.permute.xlu0 0
  %659 = vperm.xlu0 %658, %v621
  %v660 = vpop.permute.xlu0 %659
  %v670 = vunpack.c.l.b16 %v606
  %v671 = vunpack.c.l.b16 %v607
  %v672 = vunpack.c.l.b16 %v608
  %v673 = vunpack.c.l.b16 %v609
  %v674 = vunpack.c.l.b16 %v610
  %v675 = vunpack.c.l.b16 %v611
  %v676 = vunpack.c.l.b16 %v612
  %v677 = vunpack.c.l.b16 %v613
  %v678 = vpack.c.b16 %v671, %v670
  %v679 = vpack.c.b16 %v673, %v672
  %v680 = vpack.c.b16 %v675, %v674
  %v681 = vpack.c.b16 %v677, %v676
  %vm682 = vcmask 523264
  %v684 = vsel %vm682, %v678, 0
  %v687 = vsel %vm682, %v679, 0
  %v690 = vsel %vm682, %v680, 0
  %v693 = vsel %vm682, %v681, 0
  %695 = vmatpush.bf16.msra.mxu0 0
  %696 = vmatpush.bf16.msra.mxu0 0
  %697 = vmatpush.bf16.msra.mxu0 0
  %698 = vmatpush.bf16.msra.mxu0 0
  %699 = vmatpush.bf16.msra.mxu0 %v602
  %700 = vmatpush.bf16.msra.mxu0 %v598
  %701 = vmatpush.bf16.msra.mxu0 %v594
  %702 = vmatpush.bf16.msra.mxu0 %v590
  %703 = vmatmul.bf16.gmra.mxu0 %v684
  %v704 = vpop.f32.mrf.mxu0
  %v705 = vadd.f32 %v625, %v704
  %v706 = vpop.f32.mrf.mxu0
  %v707 = vadd.f32 %v630, %v706
  %708 = vmatmul.bf16.gmra.mxu0 %v687
  %v709 = vpop.f32.mrf.mxu0
  %v710 = vadd.f32 %v635, %v709
  %v711 = vpop.f32.mrf.mxu0
  %v712 = vadd.f32 %v640, %v711
  %713 = vmatmul.bf16.gmra.mxu0 %v690
  %v714 = vpop.f32.mrf.mxu0
  %v715 = vadd.f32 %v645, %v714
  %v716 = vpop.f32.mrf.mxu0
  %v717 = vadd.f32 %v650, %v716
  %718 = vmatmul.bf16.gmra.mxu0 %v693
  %v719 = vpop.f32.mrf.mxu0
  %v720 = vadd.f32 %v655, %v719
  %v721 = vpop.f32.mrf.mxu0
  %v722 = vadd.f32 %v660, %v721
  %723 = vdwg.mxu0
  %724 = vmatpush.bf16.msra.mxu0 0
  %725 = vmatpush.bf16.msra.mxu0 0
  %726 = vmatpush.bf16.msra.mxu0 0
  %727 = vmatpush.bf16.msra.mxu0 0
  %728 = vmatpush.bf16.msra.mxu0 %v603
  %729 = vmatpush.bf16.msra.mxu0 %v599
  %730 = vmatpush.bf16.msra.mxu0 %v595
  %731 = vmatpush.bf16.msra.mxu0 %v591
  %732 = vmatmul.bf16.gmra.mxu0 %v684
  %v733 = vpop.f32.mrf.mxu0
  %v734 = vadd.f32 %v625, %v733
  %v735 = vpop.f32.mrf.mxu0
  %v736 = vadd.f32 %v630, %v735
  %737 = vmatmul.bf16.gmra.mxu0 %v687
  %v738 = vpop.f32.mrf.mxu0
  %v739 = vadd.f32 %v635, %v738
  %v740 = vpop.f32.mrf.mxu0
  %v741 = vadd.f32 %v640, %v740
  %742 = vmatmul.bf16.gmra.mxu0 %v690
  %v743 = vpop.f32.mrf.mxu0
  %v744 = vadd.f32 %v645, %v743
  %v745 = vpop.f32.mrf.mxu0
  %v746 = vadd.f32 %v650, %v745
  %747 = vmatmul.bf16.gmra.mxu0 %v693
  %v748 = vpop.f32.mrf.mxu0
  %v749 = vadd.f32 %v655, %v748
  %v750 = vpop.f32.mrf.mxu0
  %v751 = vadd.f32 %v660, %v750
  %752 = vdwg.mxu0
  %753 = vmatpush.bf16.msra.mxu0 0
  %754 = vmatpush.bf16.msra.mxu0 0
  %755 = vmatpush.bf16.msra.mxu0 0
  %756 = vmatpush.bf16.msra.mxu0 0
  %757 = vmatpush.bf16.msra.mxu0 %v604
  %758 = vmatpush.bf16.msra.mxu0 %v600
  %759 = vmatpush.bf16.msra.mxu0 %v596
  %760 = vmatpush.bf16.msra.mxu0 %v592
  %761 = vmatmul.bf16.gmra.mxu0 %v684
  %v762 = vpop.f32.mrf.mxu0
  %v763 = vadd.f32 %v625, %v762
  %v764 = vpop.f32.mrf.mxu0
  %v765 = vadd.f32 %v630, %v764
  %766 = vmatmul.bf16.gmra.mxu0 %v687
  %v767 = vpop.f32.mrf.mxu0
  %v768 = vadd.f32 %v635, %v767
  %v769 = vpop.f32.mrf.mxu0
  %v770 = vadd.f32 %v640, %v769
  %771 = vmatmul.bf16.gmra.mxu0 %v690
  %v772 = vpop.f32.mrf.mxu0
  %v773 = vadd.f32 %v645, %v772
  %v774 = vpop.f32.mrf.mxu0
  %v775 = vadd.f32 %v650, %v774
  %776 = vmatmul.bf16.gmra.mxu0 %v693
  %v777 = vpop.f32.mrf.mxu0
  %v778 = vadd.f32 %v655, %v777
  %v779 = vpop.f32.mrf.mxu0
  %v780 = vadd.f32 %v660, %v779
  %781 = vdwg.mxu0
  %782 = vmatpush.bf16.msra.mxu0 0
  %783 = vmatpush.bf16.msra.mxu0 0
  %784 = vmatpush.bf16.msra.mxu0 0
  %785 = vmatpush.bf16.msra.mxu0 0
  %786 = vmatpush.bf16.msra.mxu0 %v605
  %787 = vmatpush.bf16.msra.mxu0 %v601
  %788 = vmatpush.bf16.msra.mxu0 %v597
  %789 = vmatpush.bf16.msra.mxu0 %v593
  %790 = vmatmul.bf16.gmra.mxu0 %v684
  %v791 = vpop.f32.mrf.mxu0
  %v792 = vadd.f32 %v625, %v791
  %v793 = vpop.f32.mrf.mxu0
  %v794 = vadd.f32 %v630, %v793
  %795 = vmatmul.bf16.gmra.mxu0 %v687
  %v796 = vpop.f32.mrf.mxu0
  %v797 = vadd.f32 %v635, %v796
  %v798 = vpop.f32.mrf.mxu0
  %v799 = vadd.f32 %v640, %v798
  %800 = vmatmul.bf16.gmra.mxu0 %v690
  %v801 = vpop.f32.mrf.mxu0
  %v802 = vadd.f32 %v645, %v801
  %v803 = vpop.f32.mrf.mxu0
  %v804 = vadd.f32 %v650, %v803
  %805 = vmatmul.bf16.gmra.mxu0 %v693
  %v806 = vpop.f32.mrf.mxu0
  %v807 = vadd.f32 %v655, %v806
  %v808 = vpop.f32.mrf.mxu0
  %v809 = vadd.f32 %v660, %v808
  %810 = vdwg.mxu0
  %v811 = vmax.f32 %v705, 0.0
  %v812 = vmax.f32 %v734, 0.0
  %v813 = vmax.f32 %v763, 0.0
  %v814 = vmax.f32 %v792, 0.0
  %v815 = vmax.f32 %v707, 0.0
  %v816 = vmax.f32 %v736, 0.0
  %v817 = vmax.f32 %v765, 0.0
  %v818 = vmax.f32 %v794, 0.0
  %v819 = vmax.f32 %v710, 0.0
  %v820 = vmax.f32 %v739, 0.0
  %v821 = vmax.f32 %v768, 0.0
  %v822 = vmax.f32 %v797, 0.0
  %v823 = vmax.f32 %v712, 0.0
  %v824 = vmax.f32 %v741, 0.0
  %v825 = vmax.f32 %v770, 0.0
  %v826 = vmax.f32 %v799, 0.0
  %v827 = vmax.f32 %v715, 0.0
  %v828 = vmax.f32 %v744, 0.0
  %v829 = vmax.f32 %v773, 0.0
  %v830 = vmax.f32 %v802, 0.0
  %v831 = vmax.f32 %v717, 0.0
  %v832 = vmax.f32 %v746, 0.0
  %v833 = vmax.f32 %v775, 0.0
  %v834 = vmax.f32 %v804, 0.0
  %v835 = vmax.f32 %v720, 0.0
  %v836 = vmax.f32 %v749, 0.0
  %v837 = vmax.f32 %v778, 0.0
  %v838 = vmax.f32 %v807, 0.0
  %v839 = vmax.f32 %v722, 0.0
  %v840 = vmax.f32 %v751, 0.0
  %v841 = vmax.f32 %v780, 0.0
  %v842 = vmax.f32 %v809, 0.0
  %v843 = vpack.c.bf16 %v815, %v811
  %v844 = vpack.c.bf16 %v816, %v812
  %v845 = vpack.c.bf16 %v817, %v813
  %v846 = vpack.c.bf16 %v818, %v814
  %v847 = vpack.c.bf16 %v823, %v819
  %v848 = vpack.c.bf16 %v824, %v820
  %v849 = vpack.c.bf16 %v825, %v821
  %v850 = vpack.c.bf16 %v826, %v822
  %v851 = vpack.c.bf16 %v831, %v827
  %v852 = vpack.c.bf16 %v832, %v828
  %v853 = vpack.c.bf16 %v833, %v829
  %v854 = vpack.c.bf16 %v834, %v830
  %v855 = vpack.c.bf16 %v839, %v835
  %v856 = vpack.c.bf16 %v840, %v836
  %v857 = vpack.c.bf16 %v841, %v837
  %v858 = vpack.c.bf16 %v842, %v838
  %859 = vxpose.binary.xlu0.c.b16.start [1/16] %v844, %v843, 128
  %860 = vxpose.binary.xlu0.c.b16.cont [2/16] %v848, %v847, 128
  %861 = vxpose.binary.xlu0.c.b16.cont [3/16] %v852, %v851, 128
  %862 = vxpose.binary.xlu0.c.b16.cont [4/16] %v856, %v855, 128
  %863 = vxpose.binary.xlu0.c.b16.cont [5/16] 0, 0, 128
  %864 = vxpose.binary.xlu0.c.b16.cont [6/16] 0, 0, 128
  %865 = vxpose.binary.xlu0.c.b16.cont [7/16] 0, 0, 128
  %866 = vxpose.binary.xlu0.c.b16.end [8/16] 0, 0, 128
  %v867 = vpop.trf.xlu0
  %v868 = vpop.trf.xlu0
  %v869 = vpop.trf.xlu0
  %v870 = vpop.trf.xlu0
  %v871 = vpop.trf.xlu0
  %v872 = vpop.trf.xlu0
  %v873 = vpop.trf.xlu0
  %v874 = vpop.trf.xlu0
  %v875 = vpop.trf.xlu0
  %v876 = vpop.trf.xlu0
  %v877 = vpop.trf.xlu0
  %v878 = vpop.trf.xlu0
  %v879 = vpop.trf.xlu0
  %v880 = vpop.trf.xlu0
  %v881 = vpop.trf.xlu0
  %v882 = vpop.trf.xlu0
  %883 = vxpose.binary.xlu0.c.b16.start [1/16] %v846, %v845, 128
  %884 = vxpose.binary.xlu0.c.b16.cont [2/16] %v850, %v849, 128
  %885 = vxpose.binary.xlu0.c.b16.cont [3/16] %v854, %v853, 128
  %886 = vxpose.binary.xlu0.c.b16.cont [4/16] %v858, %v857, 128
  %887 = vxpose.binary.xlu0.c.b16.cont [5/16] 0, 0, 128
  %888 = vxpose.binary.xlu0.c.b16.cont [6/16] 0, 0, 128
  %889 = vxpose.binary.xlu0.c.b16.cont [7/16] 0, 0, 128
  %890 = vxpose.binary.xlu0.c.b16.end [8/16] 0, 0, 128
  %v891 = vpop.trf.xlu0
  %v892 = vpop.trf.xlu0
  %v893 = vpop.trf.xlu0
  %v894 = vpop.trf.xlu0
  %v895 = vpop.trf.xlu0
  %v896 = vpop.trf.xlu0
  %v897 = vpop.trf.xlu0
  %v898 = vpop.trf.xlu0
  %v899 = vpop.trf.xlu0
  %v900 = vpop.trf.xlu0
  %v901 = vpop.trf.xlu0
  %v902 = vpop.trf.xlu0
  %v903 = vpop.trf.xlu0
  %v904 = vpop.trf.xlu0
  %v905 = vpop.trf.xlu0
  %v906 = vpop.trf.xlu0
  %v907 = vld [vmem:[%s5] sm:$0xf]
  %v908 = vld [vmem:[%s5 + $0x4] sm:$0xf]
  %v909 = vld [vmem:[%s5 + $0x8] sm:$0xf]
  %v910 = vld [vmem:[%s5 + $0xc] sm:$0xf]
  %v911 = vld [vmem:[%s5 + $0x10] sm:$0xf]
  %v912 = vld [vmem:[%s5 + $0x14] sm:$0xf]
  %v913 = vld [vmem:[%s5 + $0x18] sm:$0xf]
  %v914 = vld [vmem:[%s5 + $0x1c] sm:$0xf]
  %v915 = vld [vmem:[%s6] sm:$0x1]
  %v917 = vperm.slane %v915, 0
  %v927 = vunpack.c.l.b16 %v907
  %v928 = vunpack.c.l.b16 %v908
  %v929 = vunpack.c.l.b16 %v909
  %v930 = vunpack.c.l.b16 %v910
  %v931 = vunpack.c.l.b16 %v911
  %v932 = vunpack.c.l.b16 %v912
  %v933 = vunpack.c.l.b16 %v913
  %v934 = vunpack.c.l.b16 %v914
  %v935 = vpack.c.b16 %v928, %v927
  %v936 = vpack.c.b16 %v930, %v929
  %v937 = vpack.c.b16 %v932, %v931
  %v938 = vpack.c.b16 %v934, %v933
  %v944 = vsel %vm682, %v867, 0
  %v947 = vsel %vm682, %v869, 0
  %v950 = vsel %vm682, %v871, 0
  %v953 = vsel %vm682, %v873, 0
  %v956 = vsel %vm682, %v875, 0
  %v959 = vsel %vm682, %v877, 0
  %v962 = vsel %vm682, %v879, 0
  %v965 = vsel %vm682, %v881, 0
  %v968 = vsel %vm682, %v868, 0
  %v971 = vsel %vm682, %v870, 0
  %v974 = vsel %vm682, %v872, 0
  %v977 = vsel %vm682, %v874, 0
  %v980 = vsel %vm682, %v876, 0
  %v983 = vsel %vm682, %v878, 0
  %v986 = vsel %vm682, %v880, 0
  %v989 = vsel %vm682, %v882, 0
  %v992 = vsel %vm682, %v891, 0
  %v995 = vsel %vm682, %v893, 0
  %v998 = vsel %vm682, %v895, 0
  %v1001 = vsel %vm682, %v897, 0
  %v1004 = vsel %vm682, %v899, 0
  %v1007 = vsel %vm682, %v901, 0
  %v1010 = vsel %vm682, %v903, 0
  %v1013 = vsel %vm682, %v905, 0
  %v1016 = vsel %vm682, %v892, 0
  %v1019 = vsel %vm682, %v894, 0
  %v1022 = vsel %vm682, %v896, 0
  %v1025 = vsel %vm682, %v898, 0
  %v1028 = vsel %vm682, %v900, 0
  %v1031 = vsel %vm682, %v902, 0
  %v1034 = vsel %vm682, %v904, 0
  %v1037 = vsel %vm682, %v906, 0
  %1039 = vmatpush.bf16.msra.mxu0 0
  %1040 = vmatpush.bf16.msra.mxu0 0
  %1041 = vmatpush.bf16.msra.mxu0 0
  %1042 = vmatpush.bf16.msra.mxu0 0
  %1043 = vmatpush.bf16.msra.mxu0 %v938
  %1044 = vmatpush.bf16.msra.mxu0 %v937
  %1045 = vmatpush.bf16.msra.mxu0 %v936
  %1046 = vmatpush.bf16.msra.mxu0 %v935
  %1047 = vmatmul.bf16.gmra.mxu0 %v944
  %v1048 = vpop.f32.mrf.mxu0
  %v1049 = vadd.f32 %v917, %v1048
  %v1050 = vpop.f32.mrf.mxu0
  %v1051 = vadd.f32 %v917, %v1050
  %1052 = vmatmul.bf16.gmra.mxu0 %v947
  %v1053 = vpop.f32.mrf.mxu0
  %v1054 = vadd.f32 %v917, %v1053
  %v1055 = vpop.f32.mrf.mxu0
  %v1056 = vadd.f32 %v917, %v1055
  %1057 = vmatmul.bf16.gmra.mxu0 %v950
  %v1058 = vpop.f32.mrf.mxu0
  %v1059 = vadd.f32 %v917, %v1058
  %v1060 = vpop.f32.mrf.mxu0
  %v1061 = vadd.f32 %v917, %v1060
  %1062 = vmatmul.bf16.gmra.mxu0 %v953
  %v1063 = vpop.f32.mrf.mxu0
  %v1064 = vadd.f32 %v917, %v1063
  %v1065 = vpop.f32.mrf.mxu0
  %v1066 = vadd.f32 %v917, %v1065
  %1067 = vmatmul.bf16.gmra.mxu0 %v956
  %v1068 = vpop.f32.mrf.mxu0
  %v1069 = vadd.f32 %v917, %v1068
  %v1070 = vpop.f32.mrf.mxu0
  %v1071 = vadd.f32 %v917, %v1070
  %1072 = vmatmul.bf16.gmra.mxu0 %v959
  %v1073 = vpop.f32.mrf.mxu0
  %v1074 = vadd.f32 %v917, %v1073
  %v1075 = vpop.f32.mrf.mxu0
  %v1076 = vadd.f32 %v917, %v1075
  %1077 = vmatmul.bf16.gmra.mxu0 %v962
  %v1078 = vpop.f32.mrf.mxu0
  %v1079 = vadd.f32 %v917, %v1078
  %v1080 = vpop.f32.mrf.mxu0
  %v1081 = vadd.f32 %v917, %v1080
  %1082 = vmatmul.bf16.gmra.mxu0 %v965
  %v1083 = vpop.f32.mrf.mxu0
  %v1084 = vadd.f32 %v917, %v1083
  %v1085 = vpop.f32.mrf.mxu0
  %v1086 = vadd.f32 %v917, %v1085
  %1087 = vmatmul.bf16.gmra.mxu0 %v968
  %v1088 = vpop.f32.mrf.mxu0
  %v1089 = vadd.f32 %v917, %v1088
  %v1090 = vpop.f32.mrf.mxu0
  %v1091 = vadd.f32 %v917, %v1090
  %1092 = vmatmul.bf16.gmra.mxu0 %v971
  %v1093 = vpop.f32.mrf.mxu0
  %v1094 = vadd.f32 %v917, %v1093
  %v1095 = vpop.f32.mrf.mxu0
  %v1096 = vadd.f32 %v917, %v1095
  %1097 = vmatmul.bf16.gmra.mxu0 %v974
  %v1098 = vpop.f32.mrf.mxu0
  %v1099 = vadd.f32 %v917, %v1098
  %v1100 = vpop.f32.mrf.mxu0
  %v1101 = vadd.f32 %v917, %v1100
  %1102 = vmatmul.bf16.gmra.mxu0 %v977
  %v1103 = vpop.f32.mrf.mxu0
  %v1104 = vadd.f32 %v917, %v1103
  %v1105 = vpop.f32.mrf.mxu0
  %v1106 = vadd.f32 %v917, %v1105
  %1107 = vmatmul.bf16.gmra.mxu0 %v980
  %v1108 = vpop.f32.mrf.mxu0
  %v1109 = vadd.f32 %v917, %v1108
  %v1110 = vpop.f32.mrf.mxu0
  %v1111 = vadd.f32 %v917, %v1110
  %1112 = vmatmul.bf16.gmra.mxu0 %v983
  %v1113 = vpop.f32.mrf.mxu0
  %v1114 = vadd.f32 %v917, %v1113
  %v1115 = vpop.f32.mrf.mxu0
  %v1116 = vadd.f32 %v917, %v1115
  %1117 = vmatmul.bf16.gmra.mxu0 %v986
  %v1118 = vpop.f32.mrf.mxu0
  %v1119 = vadd.f32 %v917, %v1118
  %v1120 = vpop.f32.mrf.mxu0
  %v1121 = vadd.f32 %v917, %v1120
  %1122 = vmatmul.bf16.gmra.mxu0 %v989
  %v1123 = vpop.f32.mrf.mxu0
  %v1124 = vadd.f32 %v917, %v1123
  %v1125 = vpop.f32.mrf.mxu0
  %v1126 = vadd.f32 %v917, %v1125
  %1127 = vmatmul.bf16.gmra.mxu0 %v992
  %v1128 = vpop.f32.mrf.mxu0
  %v1129 = vadd.f32 %v917, %v1128
  %v1130 = vpop.f32.mrf.mxu0
  %v1131 = vadd.f32 %v917, %v1130
  %1132 = vmatmul.bf16.gmra.mxu0 %v995
  %v1133 = vpop.f32.mrf.mxu0
  %v1134 = vadd.f32 %v917, %v1133
  %v1135 = vpop.f32.mrf.mxu0
  %v1136 = vadd.f32 %v917, %v1135
  %1137 = vmatmul.bf16.gmra.mxu0 %v998
  %v1138 = vpop.f32.mrf.mxu0
  %v1139 = vadd.f32 %v917, %v1138
  %v1140 = vpop.f32.mrf.mxu0
  %v1141 = vadd.f32 %v917, %v1140
  %1142 = vmatmul.bf16.gmra.mxu0 %v1001
  %v1143 = vpop.f32.mrf.mxu0
  %v1144 = vadd.f32 %v917, %v1143
  %v1145 = vpop.f32.mrf.mxu0
  %v1146 = vadd.f32 %v917, %v1145
  %1147 = vmatmul.bf16.gmra.mxu0 %v1004
  %v1148 = vpop.f32.mrf.mxu0
  %v1149 = vadd.f32 %v917, %v1148
  %v1150 = vpop.f32.mrf.mxu0
  %v1151 = vadd.f32 %v917, %v1150
  %1152 = vmatmul.bf16.gmra.mxu0 %v1007
  %v1153 = vpop.f32.mrf.mxu0
  %v1154 = vadd.f32 %v917, %v1153
  %v1155 = vpop.f32.mrf.mxu0
  %v1156 = vadd.f32 %v917, %v1155
  %1157 = vmatmul.bf16.gmra.mxu0 %v1010
  %v1158 = vpop.f32.mrf.mxu0
  %v1159 = vadd.f32 %v917, %v1158
  %v1160 = vpop.f32.mrf.mxu0
  %v1161 = vadd.f32 %v917, %v1160
  %1162 = vmatmul.bf16.gmra.mxu0 %v1013
  %v1163 = vpop.f32.mrf.mxu0
  %v1164 = vadd.f32 %v917, %v1163
  %v1165 = vpop.f32.mrf.mxu0
  %v1166 = vadd.f32 %v917, %v1165
  %1167 = vmatmul.bf16.gmra.mxu0 %v1016
  %v1168 = vpop.f32.mrf.mxu0
  %v1169 = vadd.f32 %v917, %v1168
  %v1170 = vpop.f32.mrf.mxu0
  %v1171 = vadd.f32 %v917, %v1170
  %1172 = vmatmul.bf16.gmra.mxu0 %v1019
  %v1173 = vpop.f32.mrf.mxu0
  %v1174 = vadd.f32 %v917, %v1173
  %v1175 = vpop.f32.mrf.mxu0
  %v1176 = vadd.f32 %v917, %v1175
  %1177 = vmatmul.bf16.gmra.mxu0 %v1022
  %v1178 = vpop.f32.mrf.mxu0
  %v1179 = vadd.f32 %v917, %v1178
  %v1180 = vpop.f32.mrf.mxu0
  %v1181 = vadd.f32 %v917, %v1180
  %1182 = vmatmul.bf16.gmra.mxu0 %v1025
  %v1183 = vpop.f32.mrf.mxu0
  %v1184 = vadd.f32 %v917, %v1183
  %v1185 = vpop.f32.mrf.mxu0
  %v1186 = vadd.f32 %v917, %v1185
  %1187 = vmatmul.bf16.gmra.mxu0 %v1028
  %v1188 = vpop.f32.mrf.mxu0
  %v1189 = vadd.f32 %v917, %v1188
  %v1190 = vpop.f32.mrf.mxu0
  %v1191 = vadd.f32 %v917, %v1190
  %1192 = vmatmul.bf16.gmra.mxu0 %v1031
  %v1193 = vpop.f32.mrf.mxu0
  %v1194 = vadd.f32 %v917, %v1193
  %v1195 = vpop.f32.mrf.mxu0
  %v1196 = vadd.f32 %v917, %v1195
  %1197 = vmatmul.bf16.gmra.mxu0 %v1034
  %v1198 = vpop.f32.mrf.mxu0
  %v1199 = vadd.f32 %v917, %v1198
  %v1200 = vpop.f32.mrf.mxu0
  %v1201 = vadd.f32 %v917, %v1200
  %1202 = vmatmul.bf16.gmra.mxu0 %v1037
  %v1203 = vpop.f32.mrf.mxu0
  %v1204 = vadd.f32 %v917, %v1203
  %v1205 = vpop.f32.mrf.mxu0
  %v1206 = vadd.f32 %v917, %v1205
  %1207 = vdwg.mxu0
  %v1208 = vsel %vm333, %v1049, 0.0
  %1209 = vadd.xlane.f32.xlu0 %v1208
  %v1210 = vpop.xlane.xlu0 %1209
  %v1211 = vsel %vm333, %v1051, 0.0
  %1212 = vadd.xlane.f32.xlu0 %v1211
  %v1213 = vpop.xlane.xlu0 %1212
  %v1214 = vsel %vm333, %v1054, 0.0
  %1215 = vadd.xlane.f32.xlu0 %v1214
  %v1216 = vpop.xlane.xlu0 %1215
  %v1217 = vsel %vm333, %v1056, 0.0
  %1218 = vadd.xlane.f32.xlu0 %v1217
  %v1219 = vpop.xlane.xlu0 %1218
  %v1220 = vsel %vm333, %v1059, 0.0
  %1221 = vadd.xlane.f32.xlu0 %v1220
  %v1222 = vpop.xlane.xlu0 %1221
  %v1223 = vsel %vm333, %v1061, 0.0
  %1224 = vadd.xlane.f32.xlu0 %v1223
  %v1225 = vpop.xlane.xlu0 %1224
  %v1226 = vsel %vm333, %v1064, 0.0
  %1227 = vadd.xlane.f32.xlu0 %v1226
  %v1228 = vpop.xlane.xlu0 %1227
  %v1229 = vsel %vm333, %v1066, 0.0
  %1230 = vadd.xlane.f32.xlu0 %v1229
  %v1231 = vpop.xlane.xlu0 %1230
  %v1232 = vsel %vm333, %v1069, 0.0
  %1233 = vadd.xlane.f32.xlu0 %v1232
  %v1234 = vpop.xlane.xlu0 %1233
  %v1235 = vsel %vm333, %v1071, 0.0
  %1236 = vadd.xlane.f32.xlu0 %v1235
  %v1237 = vpop.xlane.xlu0 %1236
  %v1238 = vsel %vm333, %v1074, 0.0
  %1239 = vadd.xlane.f32.xlu0 %v1238
  %v1240 = vpop.xlane.xlu0 %1239
  %v1241 = vsel %vm333, %v1076, 0.0
  %1242 = vadd.xlane.f32.xlu0 %v1241
  %v1243 = vpop.xlane.xlu0 %1242
  %v1244 = vsel %vm333, %v1079, 0.0
  %1245 = vadd.xlane.f32.xlu0 %v1244
  %v1246 = vpop.xlane.xlu0 %1245
  %v1247 = vsel %vm333, %v1081, 0.0
  %1248 = vadd.xlane.f32.xlu0 %v1247
  %v1249 = vpop.xlane.xlu0 %1248
  %v1250 = vsel %vm333, %v1084, 0.0
  %1251 = vadd.xlane.f32.xlu0 %v1250
  %v1252 = vpop.xlane.xlu0 %1251
  %v1253 = vsel %vm333, %v1086, 0.0
  %1254 = vadd.xlane.f32.xlu0 %v1253
  %v1255 = vpop.xlane.xlu0 %1254
  %v1256 = vsel %vm333, %v1089, 0.0
  %1257 = vadd.xlane.f32.xlu0 %v1256
  %v1258 = vpop.xlane.xlu0 %1257
  %v1259 = vsel %vm333, %v1091, 0.0
  %1260 = vadd.xlane.f32.xlu0 %v1259
  %v1261 = vpop.xlane.xlu0 %1260
  %v1262 = vsel %vm333, %v1094, 0.0
  %1263 = vadd.xlane.f32.xlu0 %v1262
  %v1264 = vpop.xlane.xlu0 %1263
  %v1265 = vsel %vm333, %v1096, 0.0
  %1266 = vadd.xlane.f32.xlu0 %v1265
  %v1267 = vpop.xlane.xlu0 %1266
  %v1268 = vsel %vm333, %v1099, 0.0
  %1269 = vadd.xlane.f32.xlu0 %v1268
  %v1270 = vpop.xlane.xlu0 %1269
  %v1271 = vsel %vm333, %v1101, 0.0
  %1272 = vadd.xlane.f32.xlu0 %v1271
  %v1273 = vpop.xlane.xlu0 %1272
  %v1274 = vsel %vm333, %v1104, 0.0
  %1275 = vadd.xlane.f32.xlu0 %v1274
  %v1276 = vpop.xlane.xlu0 %1275
  %v1277 = vsel %vm333, %v1106, 0.0
  %1278 = vadd.xlane.f32.xlu0 %v1277
  %v1279 = vpop.xlane.xlu0 %1278
  %v1280 = vsel %vm333, %v1109, 0.0
  %1281 = vadd.xlane.f32.xlu0 %v1280
  %v1282 = vpop.xlane.xlu0 %1281
  %v1283 = vsel %vm333, %v1111, 0.0
  %1284 = vadd.xlane.f32.xlu0 %v1283
  %v1285 = vpop.xlane.xlu0 %1284
  %v1286 = vsel %vm333, %v1114, 0.0
  %1287 = vadd.xlane.f32.xlu0 %v1286
  %v1288 = vpop.xlane.xlu0 %1287
  %v1289 = vsel %vm333, %v1116, 0.0
  %1290 = vadd.xlane.f32.xlu0 %v1289
  %v1291 = vpop.xlane.xlu0 %1290
  %v1292 = vsel %vm333, %v1119, 0.0
  %1293 = vadd.xlane.f32.xlu0 %v1292
  %v1294 = vpop.xlane.xlu0 %1293
  %v1295 = vsel %vm333, %v1121, 0.0
  %1296 = vadd.xlane.f32.xlu0 %v1295
  %v1297 = vpop.xlane.xlu0 %1296
  %v1298 = vsel %vm333, %v1124, 0.0
  %1299 = vadd.xlane.f32.xlu0 %v1298
  %v1300 = vpop.xlane.xlu0 %1299
  %v1301 = vsel %vm333, %v1126, 0.0
  %1302 = vadd.xlane.f32.xlu0 %v1301
  %v1303 = vpop.xlane.xlu0 %1302
  %v1304 = vsel %vm333, %v1129, 0.0
  %1305 = vadd.xlane.f32.xlu0 %v1304
  %v1306 = vpop.xlane.xlu0 %1305
  %v1307 = vsel %vm333, %v1131, 0.0
  %1308 = vadd.xlane.f32.xlu0 %v1307
  %v1309 = vpop.xlane.xlu0 %1308
  %v1310 = vsel %vm333, %v1134, 0.0
  %1311 = vadd.xlane.f32.xlu0 %v1310
  %v1312 = vpop.xlane.xlu0 %1311
  %v1313 = vsel %vm333, %v1136, 0.0
  %1314 = vadd.xlane.f32.xlu0 %v1313
  %v1315 = vpop.xlane.xlu0 %1314
  %v1316 = vsel %vm333, %v1139, 0.0
  %1317 = vadd.xlane.f32.xlu0 %v1316
  %v1318 = vpop.xlane.xlu0 %1317
  %v1319 = vsel %vm333, %v1141, 0.0
  %1320 = vadd.xlane.f32.xlu0 %v1319
  %v1321 = vpop.xlane.xlu0 %1320
  %v1322 = vsel %vm333, %v1144, 0.0
  %1323 = vadd.xlane.f32.xlu0 %v1322
  %v1324 = vpop.xlane.xlu0 %1323
  %v1325 = vsel %vm333, %v1146, 0.0
  %1326 = vadd.xlane.f32.xlu0 %v1325
  %v1327 = vpop.xlane.xlu0 %1326
  %v1328 = vsel %vm333, %v1149, 0.0
  %1329 = vadd.xlane.f32.xlu0 %v1328
  %v1330 = vpop.xlane.xlu0 %1329
  %v1331 = vsel %vm333, %v1151, 0.0
  %1332 = vadd.xlane.f32.xlu0 %v1331
  %v1333 = vpop.xlane.xlu0 %1332
  %v1334 = vsel %vm333, %v1154, 0.0
  %1335 = vadd.xlane.f32.xlu0 %v1334
  %v1336 = vpop.xlane.xlu0 %1335
  %v1337 = vsel %vm333, %v1156, 0.0
  %1338 = vadd.xlane.f32.xlu0 %v1337
  %v1339 = vpop.xlane.xlu0 %1338
  %v1340 = vsel %vm333, %v1159, 0.0
  %1341 = vadd.xlane.f32.xlu0 %v1340
  %v1342 = vpop.xlane.xlu0 %1341
  %v1343 = vsel %vm333, %v1161, 0.0
  %1344 = vadd.xlane.f32.xlu0 %v1343
  %v1345 = vpop.xlane.xlu0 %1344
  %v1346 = vsel %vm333, %v1164, 0.0
  %1347 = vadd.xlane.f32.xlu0 %v1346
  %v1348 = vpop.xlane.xlu0 %1347
  %v1349 = vsel %vm333, %v1166, 0.0
  %1350 = vadd.xlane.f32.xlu0 %v1349
  %v1351 = vpop.xlane.xlu0 %1350
  %v1352 = vsel %vm333, %v1169, 0.0
  %1353 = vadd.xlane.f32.xlu0 %v1352
  %v1354 = vpop.xlane.xlu0 %1353
  %v1355 = vsel %vm333, %v1171, 0.0
  %1356 = vadd.xlane.f32.xlu0 %v1355
  %v1357 = vpop.xlane.xlu0 %1356
  %v1358 = vsel %vm333, %v1174, 0.0
  %1359 = vadd.xlane.f32.xlu0 %v1358
  %v1360 = vpop.xlane.xlu0 %1359
  %v1361 = vsel %vm333, %v1176, 0.0
  %1362 = vadd.xlane.f32.xlu0 %v1361
  %v1363 = vpop.xlane.xlu0 %1362
  %v1364 = vsel %vm333, %v1179, 0.0
  %1365 = vadd.xlane.f32.xlu0 %v1364
  %v1366 = vpop.xlane.xlu0 %1365
  %v1367 = vsel %vm333, %v1181, 0.0
  %1368 = vadd.xlane.f32.xlu0 %v1367
  %v1369 = vpop.xlane.xlu0 %1368
  %v1370 = vsel %vm333, %v1184, 0.0
  %1371 = vadd.xlane.f32.xlu0 %v1370
  %v1372 = vpop.xlane.xlu0 %1371
  %v1373 = vsel %vm333, %v1186, 0.0
  %1374 = vadd.xlane.f32.xlu0 %v1373
  %v1375 = vpop.xlane.xlu0 %1374
  %v1376 = vsel %vm333, %v1189, 0.0
  %1377 = vadd.xlane.f32.xlu0 %v1376
  %v1378 = vpop.xlane.xlu0 %1377
  %v1379 = vsel %vm333, %v1191, 0.0
  %1380 = vadd.xlane.f32.xlu0 %v1379
  %v1381 = vpop.xlane.xlu0 %1380
  %v1382 = vsel %vm333, %v1194, 0.0
  %1383 = vadd.xlane.f32.xlu0 %v1382
  %v1384 = vpop.xlane.xlu0 %1383
  %v1385 = vsel %vm333, %v1196, 0.0
  %1386 = vadd.xlane.f32.xlu0 %v1385
  %v1387 = vpop.xlane.xlu0 %1386
  %v1388 = vsel %vm333, %v1199, 0.0
  %1389 = vadd.xlane.f32.xlu0 %v1388
  %v1390 = vpop.xlane.xlu0 %1389
  %v1391 = vsel %vm333, %v1201, 0.0
  %1392 = vadd.xlane.f32.xlu0 %v1391
  %v1393 = vpop.xlane.xlu0 %1392
  %v1394 = vsel %vm333, %v1204, 0.0
  %1395 = vadd.xlane.f32.xlu0 %v1394
  %v1396 = vpop.xlane.xlu0 %1395
  %v1397 = vsel %vm333, %v1206, 0.0
  %1398 = vadd.xlane.f32.xlu0 %v1397
  %v1399 = vpop.xlane.xlu0 %1398
  %v1400 = vrcp.pop 32.0
  %v1401 = vmul.f32 32.0, %v1400
  %v1402 = vsub.f32 1.0, %v1401
  %v1403 = vmul.f32 %v1400, %v1402
  %v1404 = vadd.f32 %v1400, %v1403
  %vm1405 = vweird.f32 %v1400
  %v1406 = vsel %vm1405, %v1400, %v1404
  %v1407 = vmul.f32 %v1210, %v1406
  %v1408 = vmul.f32 %v1213, %v1406
  %v1409 = vmul.f32 %v1216, %v1406
  %v1410 = vmul.f32 %v1219, %v1406
  %v1411 = vmul.f32 %v1222, %v1406
  %v1412 = vmul.f32 %v1225, %v1406
  %v1413 = vmul.f32 %v1228, %v1406
  %v1414 = vmul.f32 %v1231, %v1406
  %v1415 = vmul.f32 %v1234, %v1406
  %v1416 = vmul.f32 %v1237, %v1406
  %v1417 = vmul.f32 %v1240, %v1406
  %v1418 = vmul.f32 %v1243, %v1406
  %v1419 = vmul.f32 %v1246, %v1406
  %v1420 = vmul.f32 %v1249, %v1406
  %v1421 = vmul.f32 %v1252, %v1406
  %v1422 = vmul.f32 %v1255, %v1406
  %v1423 = vmul.f32 %v1258, %v1406
  %v1424 = vmul.f32 %v1261, %v1406
  %v1425 = vmul.f32 %v1264, %v1406
  %v1426 = vmul.f32 %v1267, %v1406
  %v1427 = vmul.f32 %v1270, %v1406
  %v1428 = vmul.f32 %v1273, %v1406
  %v1429 = vmul.f32 %v1276, %v1406
  %v1430 = vmul.f32 %v1279, %v1406
  %v1431 = vmul.f32 %v1282, %v1406
  %v1432 = vmul.f32 %v1285, %v1406
  %v1433 = vmul.f32 %v1288, %v1406
  %v1434 = vmul.f32 %v1291, %v1406
  %v1435 = vmul.f32 %v1294, %v1406
  %v1436 = vmul.f32 %v1297, %v1406
  %v1437 = vmul.f32 %v1300, %v1406
  %v1438 = vmul.f32 %v1303, %v1406
  %v1439 = vmul.f32 %v1306, %v1406
  %v1440 = vmul.f32 %v1309, %v1406
  %v1441 = vmul.f32 %v1312, %v1406
  %v1442 = vmul.f32 %v1315, %v1406
  %v1443 = vmul.f32 %v1318, %v1406
  %v1444 = vmul.f32 %v1321, %v1406
  %v1445 = vmul.f32 %v1324, %v1406
  %v1446 = vmul.f32 %v1327, %v1406
  %v1447 = vmul.f32 %v1330, %v1406
  %v1448 = vmul.f32 %v1333, %v1406
  %v1449 = vmul.f32 %v1336, %v1406
  %v1450 = vmul.f32 %v1339, %v1406
  %v1451 = vmul.f32 %v1342, %v1406
  %v1452 = vmul.f32 %v1345, %v1406
  %v1453 = vmul.f32 %v1348, %v1406
  %v1454 = vmul.f32 %v1351, %v1406
  %v1455 = vmul.f32 %v1354, %v1406
  %v1456 = vmul.f32 %v1357, %v1406
  %v1457 = vmul.f32 %v1360, %v1406
  %v1458 = vmul.f32 %v1363, %v1406
  %v1459 = vmul.f32 %v1366, %v1406
  %v1460 = vmul.f32 %v1369, %v1406
  %v1461 = vmul.f32 %v1372, %v1406
  %v1462 = vmul.f32 %v1375, %v1406
  %v1463 = vmul.f32 %v1378, %v1406
  %v1464 = vmul.f32 %v1381, %v1406
  %v1465 = vmul.f32 %v1384, %v1406
  %v1466 = vmul.f32 %v1387, %v1406
  %v1467 = vmul.f32 %v1390, %v1406
  %v1468 = vmul.f32 %v1393, %v1406
  %v1469 = vmul.f32 %v1396, %v1406
  %v1470 = vmul.f32 %v1399, %v1406
  %v1471 = vsub.f32 %v1049, %v1407
  %v1472 = vsub.f32 %v1051, %v1408
  %v1473 = vsub.f32 %v1054, %v1409
  %v1474 = vsub.f32 %v1056, %v1410
  %v1475 = vsub.f32 %v1059, %v1411
  %v1476 = vsub.f32 %v1061, %v1412
  %v1477 = vsub.f32 %v1064, %v1413
  %v1478 = vsub.f32 %v1066, %v1414
  %v1479 = vsub.f32 %v1069, %v1415
  %v1480 = vsub.f32 %v1071, %v1416
  %v1481 = vsub.f32 %v1074, %v1417
  %v1482 = vsub.f32 %v1076, %v1418
  %v1483 = vsub.f32 %v1079, %v1419
  %v1484 = vsub.f32 %v1081, %v1420
  %v1485 = vsub.f32 %v1084, %v1421
  %v1486 = vsub.f32 %v1086, %v1422
  %v1487 = vsub.f32 %v1089, %v1423
  %v1488 = vsub.f32 %v1091, %v1424
  %v1489 = vsub.f32 %v1094, %v1425
  %v1490 = vsub.f32 %v1096, %v1426
  %v1491 = vsub.f32 %v1099, %v1427
  %v1492 = vsub.f32 %v1101, %v1428
  %v1493 = vsub.f32 %v1104, %v1429
  %v1494 = vsub.f32 %v1106, %v1430
  %v1495 = vsub.f32 %v1109, %v1431
  %v1496 = vsub.f32 %v1111, %v1432
  %v1497 = vsub.f32 %v1114, %v1433
  %v1498 = vsub.f32 %v1116, %v1434
  %v1499 = vsub.f32 %v1119, %v1435
  %v1500 = vsub.f32 %v1121, %v1436
  %v1501 = vsub.f32 %v1124, %v1437
  %v1502 = vsub.f32 %v1126, %v1438
  %v1503 = vsub.f32 %v1129, %v1439
  %v1504 = vsub.f32 %v1131, %v1440
  %v1505 = vsub.f32 %v1134, %v1441
  %v1506 = vsub.f32 %v1136, %v1442
  %v1507 = vsub.f32 %v1139, %v1443
  %v1508 = vsub.f32 %v1141, %v1444
  %v1509 = vsub.f32 %v1144, %v1445
  %v1510 = vsub.f32 %v1146, %v1446
  %v1511 = vsub.f32 %v1149, %v1447
  %v1512 = vsub.f32 %v1151, %v1448
  %v1513 = vsub.f32 %v1154, %v1449
  %v1514 = vsub.f32 %v1156, %v1450
  %v1515 = vsub.f32 %v1159, %v1451
  %v1516 = vsub.f32 %v1161, %v1452
  %v1517 = vsub.f32 %v1164, %v1453
  %v1518 = vsub.f32 %v1166, %v1454
  %v1519 = vsub.f32 %v1169, %v1455
  %v1520 = vsub.f32 %v1171, %v1456
  %v1521 = vsub.f32 %v1174, %v1457
  %v1522 = vsub.f32 %v1176, %v1458
  %v1523 = vsub.f32 %v1179, %v1459
  %v1524 = vsub.f32 %v1181, %v1460
  %v1525 = vsub.f32 %v1184, %v1461
  %v1526 = vsub.f32 %v1186, %v1462
  %v1527 = vsub.f32 %v1189, %v1463
  %v1528 = vsub.f32 %v1191, %v1464
  %v1529 = vsub.f32 %v1194, %v1465
  %v1530 = vsub.f32 %v1196, %v1466
  %v1531 = vsub.f32 %v1199, %v1467
  %v1532 = vsub.f32 %v1201, %v1468
  %v1533 = vsub.f32 %v1204, %v1469
  %v1534 = vsub.f32 %v1206, %v1470
  %v1535 = vmul.f32 %v1471, %v1471
  %v1536 = vmul.f32 %v1472, %v1472
  %v1537 = vmul.f32 %v1473, %v1473
  %v1538 = vmul.f32 %v1474, %v1474
  %v1539 = vmul.f32 %v1475, %v1475
  %v1540 = vmul.f32 %v1476, %v1476
  %v1541 = vmul.f32 %v1477, %v1477
  %v1542 = vmul.f32 %v1478, %v1478
  %v1543 = vmul.f32 %v1479, %v1479
  %v1544 = vmul.f32 %v1480, %v1480
  %v1545 = vmul.f32 %v1481, %v1481
  %v1546 = vmul.f32 %v1482, %v1482
  %v1547 = vmul.f32 %v1483, %v1483
  %v1548 = vmul.f32 %v1484, %v1484
  %v1549 = vmul.f32 %v1485, %v1485
  %v1550 = vmul.f32 %v1486, %v1486
  %v1551 = vmul.f32 %v1487, %v1487
  %v1552 = vmul.f32 %v1488, %v1488
  %v1553 = vmul.f32 %v1489, %v1489
  %v1554 = vmul.f32 %v1490, %v1490
  %v1555 = vmul.f32 %v1491, %v1491
  %v1556 = vmul.f32 %v1492, %v1492
  %v1557 = vmul.f32 %v1493, %v1493
  %v1558 = vmul.f32 %v1494, %v1494
  %v1559 = vmul.f32 %v1495, %v1495
  %v1560 = vmul.f32 %v1496, %v1496
  %v1561 = vmul.f32 %v1497, %v1497
  %v1562 = vmul.f32 %v1498, %v1498
  %v1563 = vmul.f32 %v1499, %v1499
  %v1564 = vmul.f32 %v1500, %v1500
  %v1565 = vmul.f32 %v1501, %v1501
  %v1566 = vmul.f32 %v1502, %v1502
  %v1567 = vmul.f32 %v1503, %v1503
  %v1568 = vmul.f32 %v1504, %v1504
  %v1569 = vmul.f32 %v1505, %v1505
  %v1570 = vmul.f32 %v1506, %v1506
  %v1571 = vmul.f32 %v1507, %v1507
  %v1572 = vmul.f32 %v1508, %v1508
  %v1573 = vmul.f32 %v1509, %v1509
  %v1574 = vmul.f32 %v1510, %v1510
  %v1575 = vmul.f32 %v1511, %v1511
  %v1576 = vmul.f32 %v1512, %v1512
  %v1577 = vmul.f32 %v1513, %v1513
  %v1578 = vmul.f32 %v1514, %v1514
  %v1579 = vmul.f32 %v1515, %v1515
  %v1580 = vmul.f32 %v1516, %v1516
  %v1581 = vmul.f32 %v1517, %v1517
  %v1582 = vmul.f32 %v1518, %v1518
  %v1583 = vmul.f32 %v1519, %v1519
  %v1584 = vmul.f32 %v1520, %v1520
  %v1585 = vmul.f32 %v1521, %v1521
  %v1586 = vmul.f32 %v1522, %v1522
  %v1587 = vmul.f32 %v1523, %v1523
  %v1588 = vmul.f32 %v1524, %v1524
  %v1589 = vmul.f32 %v1525, %v1525
  %v1590 = vmul.f32 %v1526, %v1526
  %v1591 = vmul.f32 %v1527, %v1527
  %v1592 = vmul.f32 %v1528, %v1528
  %v1593 = vmul.f32 %v1529, %v1529
  %v1594 = vmul.f32 %v1530, %v1530
  %v1595 = vmul.f32 %v1531, %v1531
  %v1596 = vmul.f32 %v1532, %v1532
  %v1597 = vmul.f32 %v1533, %v1533
  %v1598 = vmul.f32 %v1534, %v1534
  %v1599 = vsel %vm333, %v1535, 0.0
  %1600 = vadd.xlane.f32.xlu0 %v1599
  %v1601 = vpop.xlane.xlu0 %1600
  %v1602 = vsel %vm333, %v1536, 0.0
  %1603 = vadd.xlane.f32.xlu0 %v1602
  %v1604 = vpop.xlane.xlu0 %1603
  %v1605 = vsel %vm333, %v1537, 0.0
  %1606 = vadd.xlane.f32.xlu0 %v1605
  %v1607 = vpop.xlane.xlu0 %1606
  %v1608 = vsel %vm333, %v1538, 0.0
  %1609 = vadd.xlane.f32.xlu0 %v1608
  %v1610 = vpop.xlane.xlu0 %1609
  %v1611 = vsel %vm333, %v1539, 0.0
  %1612 = vadd.xlane.f32.xlu0 %v1611
  %v1613 = vpop.xlane.xlu0 %1612
  %v1614 = vsel %vm333, %v1540, 0.0
  %1615 = vadd.xlane.f32.xlu0 %v1614
  %v1616 = vpop.xlane.xlu0 %1615
  %v1617 = vsel %vm333, %v1541, 0.0
  %1618 = vadd.xlane.f32.xlu0 %v1617
  %v1619 = vpop.xlane.xlu0 %1618
  %v1620 = vsel %vm333, %v1542, 0.0
  %1621 = vadd.xlane.f32.xlu0 %v1620
  %v1622 = vpop.xlane.xlu0 %1621
  %v1623 = vsel %vm333, %v1543, 0.0
  %1624 = vadd.xlane.f32.xlu0 %v1623
  %v1625 = vpop.xlane.xlu0 %1624
  %v1626 = vsel %vm333, %v1544, 0.0
  %1627 = vadd.xlane.f32.xlu0 %v1626
  %v1628 = vpop.xlane.xlu0 %1627
  %v1629 = vsel %vm333, %v1545, 0.0
  %1630 = vadd.xlane.f32.xlu0 %v1629
  %v1631 = vpop.xlane.xlu0 %1630
  %v1632 = vsel %vm333, %v1546, 0.0
  %1633 = vadd.xlane.f32.xlu0 %v1632
  %v1634 = vpop.xlane.xlu0 %1633
  %v1635 = vsel %vm333, %v1547, 0.0
  %1636 = vadd.xlane.f32.xlu0 %v1635
  %v1637 = vpop.xlane.xlu0 %1636
  %v1638 = vsel %vm333, %v1548, 0.0
  %1639 = vadd.xlane.f32.xlu0 %v1638
  %v1640 = vpop.xlane.xlu0 %1639
  %v1641 = vsel %vm333, %v1549, 0.0
  %1642 = vadd.xlane.f32.xlu0 %v1641
  %v1643 = vpop.xlane.xlu0 %1642
  %v1644 = vsel %vm333, %v1550, 0.0
  %1645 = vadd.xlane.f32.xlu0 %v1644
  %v1646 = vpop.xlane.xlu0 %1645
  %v1647 = vsel %vm333, %v1551, 0.0
  %1648 = vadd.xlane.f32.xlu0 %v1647
  %v1649 = vpop.xlane.xlu0 %1648
  %v1650 = vsel %vm333, %v1552, 0.0
  %1651 = vadd.xlane.f32.xlu0 %v1650
  %v1652 = vpop.xlane.xlu0 %1651
  %v1653 = vsel %vm333, %v1553, 0.0
  %1654 = vadd.xlane.f32.xlu0 %v1653
  %v1655 = vpop.xlane.xlu0 %1654
  %v1656 = vsel %vm333, %v1554, 0.0
  %1657 = vadd.xlane.f32.xlu0 %v1656
  %v1658 = vpop.xlane.xlu0 %1657
  %v1659 = vsel %vm333, %v1555, 0.0
  %1660 = vadd.xlane.f32.xlu0 %v1659
  %v1661 = vpop.xlane.xlu0 %1660
  %v1662 = vsel %vm333, %v1556, 0.0
  %1663 = vadd.xlane.f32.xlu0 %v1662
  %v1664 = vpop.xlane.xlu0 %1663
  %v1665 = vsel %vm333, %v1557, 0.0
  %1666 = vadd.xlane.f32.xlu0 %v1665
  %v1667 = vpop.xlane.xlu0 %1666
  %v1668 = vsel %vm333, %v1558, 0.0
  %1669 = vadd.xlane.f32.xlu0 %v1668
  %v1670 = vpop.xlane.xlu0 %1669
  %v1671 = vsel %vm333, %v1559, 0.0
  %1672 = vadd.xlane.f32.xlu0 %v1671
  %v1673 = vpop.xlane.xlu0 %1672
  %v1674 = vsel %vm333, %v1560, 0.0
  %1675 = vadd.xlane.f32.xlu0 %v1674
  %v1676 = vpop.xlane.xlu0 %1675
  %v1677 = vsel %vm333, %v1561, 0.0
  %1678 = vadd.xlane.f32.xlu0 %v1677
  %v1679 = vpop.xlane.xlu0 %1678
  %v1680 = vsel %vm333, %v1562, 0.0
  %1681 = vadd.xlane.f32.xlu0 %v1680
  %v1682 = vpop.xlane.xlu0 %1681
  %v1683 = vsel %vm333, %v1563, 0.0
  %1684 = vadd.xlane.f32.xlu0 %v1683
  %v1685 = vpop.xlane.xlu0 %1684
  %v1686 = vsel %vm333, %v1564, 0.0
  %1687 = vadd.xlane.f32.xlu0 %v1686
  %v1688 = vpop.xlane.xlu0 %1687
  %v1689 = vsel %vm333, %v1565, 0.0
  %1690 = vadd.xlane.f32.xlu0 %v1689
  %v1691 = vpop.xlane.xlu0 %1690
  %v1692 = vsel %vm333, %v1566, 0.0
  %1693 = vadd.xlane.f32.xlu0 %v1692
  %v1694 = vpop.xlane.xlu0 %1693
  %v1695 = vsel %vm333, %v1567, 0.0
  %1696 = vadd.xlane.f32.xlu0 %v1695
  %v1697 = vpop.xlane.xlu0 %1696
  %v1698 = vsel %vm333, %v1568, 0.0
  %1699 = vadd.xlane.f32.xlu0 %v1698
  %v1700 = vpop.xlane.xlu0 %1699
  %v1701 = vsel %vm333, %v1569, 0.0
  %1702 = vadd.xlane.f32.xlu0 %v1701
  %v1703 = vpop.xlane.xlu0 %1702
  %v1704 = vsel %vm333, %v1570, 0.0
  %1705 = vadd.xlane.f32.xlu0 %v1704
  %v1706 = vpop.xlane.xlu0 %1705
  %v1707 = vsel %vm333, %v1571, 0.0
  %1708 = vadd.xlane.f32.xlu0 %v1707
  %v1709 = vpop.xlane.xlu0 %1708
  %v1710 = vsel %vm333, %v1572, 0.0
  %1711 = vadd.xlane.f32.xlu0 %v1710
  %v1712 = vpop.xlane.xlu0 %1711
  %v1713 = vsel %vm333, %v1573, 0.0
  %1714 = vadd.xlane.f32.xlu0 %v1713
  %v1715 = vpop.xlane.xlu0 %1714
  %v1716 = vsel %vm333, %v1574, 0.0
  %1717 = vadd.xlane.f32.xlu0 %v1716
  %v1718 = vpop.xlane.xlu0 %1717
  %v1719 = vsel %vm333, %v1575, 0.0
  %1720 = vadd.xlane.f32.xlu0 %v1719
  %v1721 = vpop.xlane.xlu0 %1720
  %v1722 = vsel %vm333, %v1576, 0.0
  %1723 = vadd.xlane.f32.xlu0 %v1722
  %v1724 = vpop.xlane.xlu0 %1723
  %v1725 = vsel %vm333, %v1577, 0.0
  %1726 = vadd.xlane.f32.xlu0 %v1725
  %v1727 = vpop.xlane.xlu0 %1726
  %v1728 = vsel %vm333, %v1578, 0.0
  %1729 = vadd.xlane.f32.xlu0 %v1728
  %v1730 = vpop.xlane.xlu0 %1729
  %v1731 = vsel %vm333, %v1579, 0.0
  %1732 = vadd.xlane.f32.xlu0 %v1731
  %v1733 = vpop.xlane.xlu0 %1732
  %v1734 = vsel %vm333, %v1580, 0.0
  %1735 = vadd.xlane.f32.xlu0 %v1734
  %v1736 = vpop.xlane.xlu0 %1735
  %v1737 = vsel %vm333, %v1581, 0.0
  %1738 = vadd.xlane.f32.xlu0 %v1737
  %v1739 = vpop.xlane.xlu0 %1738
  %v1740 = vsel %vm333, %v1582, 0.0
  %1741 = vadd.xlane.f32.xlu0 %v1740
  %v1742 = vpop.xlane.xlu0 %1741
  %v1743 = vsel %vm333, %v1583, 0.0
  %1744 = vadd.xlane.f32.xlu0 %v1743
  %v1745 = vpop.xlane.xlu0 %1744
  %v1746 = vsel %vm333, %v1584, 0.0
  %1747 = vadd.xlane.f32.xlu0 %v1746
  %v1748 = vpop.xlane.xlu0 %1747
  %v1749 = vsel %vm333, %v1585, 0.0
  %1750 = vadd.xlane.f32.xlu0 %v1749
  %v1751 = vpop.xlane.xlu0 %1750
  %v1752 = vsel %vm333, %v1586, 0.0
  %1753 = vadd.xlane.f32.xlu0 %v1752
  %v1754 = vpop.xlane.xlu0 %1753
  %v1755 = vsel %vm333, %v1587, 0.0
  %1756 = vadd.xlane.f32.xlu0 %v1755
  %v1757 = vpop.xlane.xlu0 %1756
  %v1758 = vsel %vm333, %v1588, 0.0
  %1759 = vadd.xlane.f32.xlu0 %v1758
  %v1760 = vpop.xlane.xlu0 %1759
  %v1761 = vsel %vm333, %v1589, 0.0
  %1762 = vadd.xlane.f32.xlu0 %v1761
  %v1763 = vpop.xlane.xlu0 %1762
  %v1764 = vsel %vm333, %v1590, 0.0
  %1765 = vadd.xlane.f32.xlu0 %v1764
  %v1766 = vpop.xlane.xlu0 %1765
  %v1767 = vsel %vm333, %v1591, 0.0
  %1768 = vadd.xlane.f32.xlu0 %v1767
  %v1769 = vpop.xlane.xlu0 %1768
  %v1770 = vsel %vm333, %v1592, 0.0
  %1771 = vadd.xlane.f32.xlu0 %v1770
  %v1772 = vpop.xlane.xlu0 %1771
  %v1773 = vsel %vm333, %v1593, 0.0
  %1774 = vadd.xlane.f32.xlu0 %v1773
  %v1775 = vpop.xlane.xlu0 %1774
  %v1776 = vsel %vm333, %v1594, 0.0
  %1777 = vadd.xlane.f32.xlu0 %v1776
  %v1778 = vpop.xlane.xlu0 %1777
  %v1779 = vsel %vm333, %v1595, 0.0
  %1780 = vadd.xlane.f32.xlu0 %v1779
  %v1781 = vpop.xlane.xlu0 %1780
  %v1782 = vsel %vm333, %v1596, 0.0
  %1783 = vadd.xlane.f32.xlu0 %v1782
  %v1784 = vpop.xlane.xlu0 %1783
  %v1785 = vsel %vm333, %v1597, 0.0
  %1786 = vadd.xlane.f32.xlu0 %v1785
  %v1787 = vpop.xlane.xlu0 %1786
  %v1788 = vsel %vm333, %v1598, 0.0
  %1789 = vadd.xlane.f32.xlu0 %v1788
  %v1790 = vpop.xlane.xlu0 %1789
  %v1791 = vmul.f32 %v1601, %v1406
  %v1792 = vmul.f32 %v1604, %v1406
  %v1793 = vmul.f32 %v1607, %v1406
  %v1794 = vmul.f32 %v1610, %v1406
  %v1795 = vmul.f32 %v1613, %v1406
  %v1796 = vmul.f32 %v1616, %v1406
  %v1797 = vmul.f32 %v1619, %v1406
  %v1798 = vmul.f32 %v1622, %v1406
  %v1799 = vmul.f32 %v1625, %v1406
  %v1800 = vmul.f32 %v1628, %v1406
  %v1801 = vmul.f32 %v1631, %v1406
  %v1802 = vmul.f32 %v1634, %v1406
  %v1803 = vmul.f32 %v1637, %v1406
  %v1804 = vmul.f32 %v1640, %v1406
  %v1805 = vmul.f32 %v1643, %v1406
  %v1806 = vmul.f32 %v1646, %v1406
  %v1807 = vmul.f32 %v1649, %v1406
  %v1808 = vmul.f32 %v1652, %v1406
  %v1809 = vmul.f32 %v1655, %v1406
  %v1810 = vmul.f32 %v1658, %v1406
  %v1811 = vmul.f32 %v1661, %v1406
  %v1812 = vmul.f32 %v1664, %v1406
  %v1813 = vmul.f32 %v1667, %v1406
  %v1814 = vmul.f32 %v1670, %v1406
  %v1815 = vmul.f32 %v1673, %v1406
  %v1816 = vmul.f32 %v1676, %v1406
  %v1817 = vmul.f32 %v1679, %v1406
  %v1818 = vmul.f32 %v1682, %v1406
  %v1819 = vmul.f32 %v1685, %v1406
  %v1820 = vmul.f32 %v1688, %v1406
  %v1821 = vmul.f32 %v1691, %v1406
  %v1822 = vmul.f32 %v1694, %v1406
  %v1823 = vmul.f32 %v1697, %v1406
  %v1824 = vmul.f32 %v1700, %v1406
  %v1825 = vmul.f32 %v1703, %v1406
  %v1826 = vmul.f32 %v1706, %v1406
  %v1827 = vmul.f32 %v1709, %v1406
  %v1828 = vmul.f32 %v1712, %v1406
  %v1829 = vmul.f32 %v1715, %v1406
  %v1830 = vmul.f32 %v1718, %v1406
  %v1831 = vmul.f32 %v1721, %v1406
  %v1832 = vmul.f32 %v1724, %v1406
  %v1833 = vmul.f32 %v1727, %v1406
  %v1834 = vmul.f32 %v1730, %v1406
  %v1835 = vmul.f32 %v1733, %v1406
  %v1836 = vmul.f32 %v1736, %v1406
  %v1837 = vmul.f32 %v1739, %v1406
  %v1838 = vmul.f32 %v1742, %v1406
  %v1839 = vmul.f32 %v1745, %v1406
  %v1840 = vmul.f32 %v1748, %v1406
  %v1841 = vmul.f32 %v1751, %v1406
  %v1842 = vmul.f32 %v1754, %v1406
  %v1843 = vmul.f32 %v1757, %v1406
  %v1844 = vmul.f32 %v1760, %v1406
  %v1845 = vmul.f32 %v1763, %v1406
  %v1846 = vmul.f32 %v1766, %v1406
  %v1847 = vmul.f32 %v1769, %v1406
  %v1848 = vmul.f32 %v1772, %v1406
  %v1849 = vmul.f32 %v1775, %v1406
  %v1850 = vmul.f32 %v1778, %v1406
  %v1851 = vmul.f32 %v1781, %v1406
  %v1852 = vmul.f32 %v1784, %v1406
  %v1853 = vmul.f32 %v1787, %v1406
  %v1854 = vmul.f32 %v1790, %v1406
  %v1855 = vadd.f32 %v1791, 1e-05
  %v1856 = vadd.f32 %v1792, 1e-05
  %v1857 = vadd.f32 %v1793, 1e-05
  %v1858 = vadd.f32 %v1794, 1e-05
  %v1859 = vadd.f32 %v1795, 1e-05
  %v1860 = vadd.f32 %v1796, 1e-05
  %v1861 = vadd.f32 %v1797, 1e-05
  %v1862 = vadd.f32 %v1798, 1e-05
  %v1863 = vadd.f32 %v1799, 1e-05
  %v1864 = vadd.f32 %v1800, 1e-05
  %v1865 = vadd.f32 %v1801, 1e-05
  %v1866 = vadd.f32 %v1802, 1e-05
  %v1867 = vadd.f32 %v1803, 1e-05
  %v1868 = vadd.f32 %v1804, 1e-05
  %v1869 = vadd.f32 %v1805, 1e-05
  %v1870 = vadd.f32 %v1806, 1e-05
  %v1871 = vadd.f32 %v1807, 1e-05
  %v1872 = vadd.f32 %v1808, 1e-05
  %v1873 = vadd.f32 %v1809, 1e-05
  %v1874 = vadd.f32 %v1810, 1e-05
  %v1875 = vadd.f32 %v1811, 1e-05
  %v1876 = vadd.f32 %v1812, 1e-05
  %v1877 = vadd.f32 %v1813, 1e-05
  %v1878 = vadd.f32 %v1814, 1e-05
  %v1879 = vadd.f32 %v1815, 1e-05
  %v1880 = vadd.f32 %v1816, 1e-05
  %v1881 = vadd.f32 %v1817, 1e-05
  %v1882 = vadd.f32 %v1818, 1e-05
  %v1883 = vadd.f32 %v1819, 1e-05
  %v1884 = vadd.f32 %v1820, 1e-05
  %v1885 = vadd.f32 %v1821, 1e-05
  %v1886 = vadd.f32 %v1822, 1e-05
  %v1887 = vadd.f32 %v1823, 1e-05
  %v1888 = vadd.f32 %v1824, 1e-05
  %v1889 = vadd.f32 %v1825, 1e-05
  %v1890 = vadd.f32 %v1826, 1e-05
  %v1891 = vadd.f32 %v1827, 1e-05
  %v1892 = vadd.f32 %v1828, 1e-05
  %v1893 = vadd.f32 %v1829, 1e-05
  %v1894 = vadd.f32 %v1830, 1e-05
  %v1895 = vadd.f32 %v1831, 1e-05
  %v1896 = vadd.f32 %v1832, 1e-05
  %v1897 = vadd.f32 %v1833, 1e-05
  %v1898 = vadd.f32 %v1834, 1e-05
  %v1899 = vadd.f32 %v1835, 1e-05
  %v1900 = vadd.f32 %v1836, 1e-05
  %v1901 = vadd.f32 %v1837, 1e-05
  %v1902 = vadd.f32 %v1838, 1e-05
  %v1903 = vadd.f32 %v1839, 1e-05
  %v1904 = vadd.f32 %v1840, 1e-05
  %v1905 = vadd.f32 %v1841, 1e-05
  %v1906 = vadd.f32 %v1842, 1e-05
  %v1907 = vadd.f32 %v1843, 1e-05
  %v1908 = vadd.f32 %v1844, 1e-05
  %v1909 = vadd.f32 %v1845, 1e-05
  %v1910 = vadd.f32 %v1846, 1e-05
  %v1911 = vadd.f32 %v1847, 1e-05
  %v1912 = vadd.f32 %v1848, 1e-05
  %v1913 = vadd.f32 %v1849, 1e-05
  %v1914 = vadd.f32 %v1850, 1e-05
  %v1915 = vadd.f32 %v1851, 1e-05
  %v1916 = vadd.f32 %v1852, 1e-05
  %v1917 = vadd.f32 %v1853, 1e-05
  %v1918 = vadd.f32 %v1854, 1e-05
  %v1919 = vrsqrt.pop %v1855
  %v1920 = vmul.f32 %v1919, %v1855
  %v1921 = vmul.f32 %v1920, %v1919
  %v1922 = vmul.f32 0.5, %v1921
  %v1923 = vsub.f32 1.5, %v1922
  %v1924 = vmul.f32 %v1919, %v1923
  %vm1925 = vweird.f32 %v1855
  %vm1926 = vweird.f32 %v1919
  %vm1927 = vmor %vm1925, %vm1926
  %v1928 = vsel %vm1927, %v1919, %v1924
  %v1929 = vrsqrt.pop %v1856
  %v1930 = vmul.f32 %v1929, %v1856
  %v1931 = vmul.f32 %v1930, %v1929
  %v1932 = vmul.f32 0.5, %v1931
  %v1933 = vsub.f32 1.5, %v1932
  %v1934 = vmul.f32 %v1929, %v1933
  %vm1935 = vweird.f32 %v1856
  %vm1936 = vweird.f32 %v1929
  %vm1937 = vmor %vm1935, %vm1936
  %v1938 = vsel %vm1937, %v1929, %v1934
  %v1939 = vrsqrt.pop %v1857
  %v1940 = vmul.f32 %v1939, %v1857
  %v1941 = vmul.f32 %v1940, %v1939
  %v1942 = vmul.f32 0.5, %v1941
  %v1943 = vsub.f32 1.5, %v1942
  %v1944 = vmul.f32 %v1939, %v1943
  %vm1945 = vweird.f32 %v1857
  %vm1946 = vweird.f32 %v1939
  %vm1947 = vmor %vm1945, %vm1946
  %v1948 = vsel %vm1947, %v1939, %v1944
  %v1949 = vrsqrt.pop %v1858
  %v1950 = vmul.f32 %v1949, %v1858
  %v1951 = vmul.f32 %v1950, %v1949
  %v1952 = vmul.f32 0.5, %v1951
  %v1953 = vsub.f32 1.5, %v1952
  %v1954 = vmul.f32 %v1949, %v1953
  %vm1955 = vweird.f32 %v1858
  %vm1956 = vweird.f32 %v1949
  %vm1957 = vmor %vm1955, %vm1956
  %v1958 = vsel %vm1957, %v1949, %v1954
  %v1959 = vrsqrt.pop %v1859
  %v1960 = vmul.f32 %v1959, %v1859
  %v1961 = vmul.f32 %v1960, %v1959
  %v1962 = vmul.f32 0.5, %v1961
  %v1963 = vsub.f32 1.5, %v1962
  %v1964 = vmul.f32 %v1959, %v1963
  %vm1965 = vweird.f32 %v1859
  %vm1966 = vweird.f32 %v1959
  %vm1967 = vmor %vm1965, %vm1966
  %v1968 = vsel %vm1967, %v1959, %v1964
  %v1969 = vrsqrt.pop %v1860
  %v1970 = vmul.f32 %v1969, %v1860
  %v1971 = vmul.f32 %v1970, %v1969
  %v1972 = vmul.f32 0.5, %v1971
  %v1973 = vsub.f32 1.5, %v1972
  %v1974 = vmul.f32 %v1969, %v1973
  %vm1975 = vweird.f32 %v1860
  %vm1976 = vweird.f32 %v1969
  %vm1977 = vmor %vm1975, %vm1976
  %v1978 = vsel %vm1977, %v1969, %v1974
  %v1979 = vrsqrt.pop %v1861
  %v1980 = vmul.f32 %v1979, %v1861
  %v1981 = vmul.f32 %v1980, %v1979
  %v1982 = vmul.f32 0.5, %v1981
  %v1983 = vsub.f32 1.5, %v1982
  %v1984 = vmul.f32 %v1979, %v1983
  %vm1985 = vweird.f32 %v1861
  %vm1986 = vweird.f32 %v1979
  %vm1987 = vmor %vm1985, %vm1986
  %v1988 = vsel %vm1987, %v1979, %v1984
  %v1989 = vrsqrt.pop %v1862
  %v1990 = vmul.f32 %v1989, %v1862
  %v1991 = vmul.f32 %v1990, %v1989
  %v1992 = vmul.f32 0.5, %v1991
  %v1993 = vsub.f32 1.5, %v1992
  %v1994 = vmul.f32 %v1989, %v1993
  %vm1995 = vweird.f32 %v1862
  %vm1996 = vweird.f32 %v1989
  %vm1997 = vmor %vm1995, %vm1996
  %v1998 = vsel %vm1997, %v1989, %v1994
  %v1999 = vrsqrt.pop %v1863
  %v2000 = vmul.f32 %v1999, %v1863
  %v2001 = vmul.f32 %v2000, %v1999
  %v2002 = vmul.f32 0.5, %v2001
  %v2003 = vsub.f32 1.5, %v2002
  %v2004 = vmul.f32 %v1999, %v2003
  %vm2005 = vweird.f32 %v1863
  %vm2006 = vweird.f32 %v1999
  %vm2007 = vmor %vm2005, %vm2006
  %v2008 = vsel %vm2007, %v1999, %v2004
  %v2009 = vrsqrt.pop %v1864
  %v2010 = vmul.f32 %v2009, %v1864
  %v2011 = vmul.f32 %v2010, %v2009
  %v2012 = vmul.f32 0.5, %v2011
  %v2013 = vsub.f32 1.5, %v2012
  %v2014 = vmul.f32 %v2009, %v2013
  %vm2015 = vweird.f32 %v1864
  %vm2016 = vweird.f32 %v2009
  %vm2017 = vmor %vm2015, %vm2016
  %v2018 = vsel %vm2017, %v2009, %v2014
  %v2019 = vrsqrt.pop %v1865
  %v2020 = vmul.f32 %v2019, %v1865
  %v2021 = vmul.f32 %v2020, %v2019
  %v2022 = vmul.f32 0.5, %v2021
  %v2023 = vsub.f32 1.5, %v2022
  %v2024 = vmul.f32 %v2019, %v2023
  %vm2025 = vweird.f32 %v1865
  %vm2026 = vweird.f32 %v2019
  %vm2027 = vmor %vm2025, %vm2026
  %v2028 = vsel %vm2027, %v2019, %v2024
  %v2029 = vrsqrt.pop %v1866
  %v2030 = vmul.f32 %v2029, %v1866
  %v2031 = vmul.f32 %v2030, %v2029
  %v2032 = vmul.f32 0.5, %v2031
  %v2033 = vsub.f32 1.5, %v2032
  %v2034 = vmul.f32 %v2029, %v2033
  %vm2035 = vweird.f32 %v1866
  %vm2036 = vweird.f32 %v2029
  %vm2037 = vmor %vm2035, %vm2036
  %v2038 = vsel %vm2037, %v2029, %v2034
  %v2039 = vrsqrt.pop %v1867
  %v2040 = vmul.f32 %v2039, %v1867
  %v2041 = vmul.f32 %v2040, %v2039
  %v2042 = vmul.f32 0.5, %v2041
  %v2043 = vsub.f32 1.5, %v2042
  %v2044 = vmul.f32 %v2039, %v2043
  %vm2045 = vweird.f32 %v1867
  %vm2046 = vweird.f32 %v2039
  %vm2047 = vmor %vm2045, %vm2046
  %v2048 = vsel %vm2047, %v2039, %v2044
  %v2049 = vrsqrt.pop %v1868
  %v2050 = vmul.f32 %v2049, %v1868
  %v2051 = vmul.f32 %v2050, %v2049
  %v2052 = vmul.f32 0.5, %v2051
  %v2053 = vsub.f32 1.5, %v2052
  %v2054 = vmul.f32 %v2049, %v2053
  %vm2055 = vweird.f32 %v1868
  %vm2056 = vweird.f32 %v2049
  %vm2057 = vmor %vm2055, %vm2056
  %v2058 = vsel %vm2057, %v2049, %v2054
  %v2059 = vrsqrt.pop %v1869
  %v2060 = vmul.f32 %v2059, %v1869
  %v2061 = vmul.f32 %v2060, %v2059
  %v2062 = vmul.f32 0.5, %v2061
  %v2063 = vsub.f32 1.5, %v2062
  %v2064 = vmul.f32 %v2059, %v2063
  %vm2065 = vweird.f32 %v1869
  %vm2066 = vweird.f32 %v2059
  %vm2067 = vmor %vm2065, %vm2066
  %v2068 = vsel %vm2067, %v2059, %v2064
  %v2069 = vrsqrt.pop %v1870
  %v2070 = vmul.f32 %v2069, %v1870
  %v2071 = vmul.f32 %v2070, %v2069
  %v2072 = vmul.f32 0.5, %v2071
  %v2073 = vsub.f32 1.5, %v2072
  %v2074 = vmul.f32 %v2069, %v2073
  %vm2075 = vweird.f32 %v1870
  %vm2076 = vweird.f32 %v2069
  %vm2077 = vmor %vm2075, %vm2076
  %v2078 = vsel %vm2077, %v2069, %v2074
  %v2079 = vrsqrt.pop %v1871
  %v2080 = vmul.f32 %v2079, %v1871
  %v2081 = vmul.f32 %v2080, %v2079
  %v2082 = vmul.f32 0.5, %v2081
  %v2083 = vsub.f32 1.5, %v2082
  %v2084 = vmul.f32 %v2079, %v2083
  %vm2085 = vweird.f32 %v1871
  %vm2086 = vweird.f32 %v2079
  %vm2087 = vmor %vm2085, %vm2086
  %v2088 = vsel %vm2087, %v2079, %v2084
  %v2089 = vrsqrt.pop %v1872
  %v2090 = vmul.f32 %v2089, %v1872
  %v2091 = vmul.f32 %v2090, %v2089
  %v2092 = vmul.f32 0.5, %v2091
  %v2093 = vsub.f32 1.5, %v2092
  %v2094 = vmul.f32 %v2089, %v2093
  %vm2095 = vweird.f32 %v1872
  %vm2096 = vweird.f32 %v2089
  %vm2097 = vmor %vm2095, %vm2096
  %v2098 = vsel %vm2097, %v2089, %v2094
  %v2099 = vrsqrt.pop %v1873
  %v2100 = vmul.f32 %v2099, %v1873
  %v2101 = vmul.f32 %v2100, %v2099
  %v2102 = vmul.f32 0.5, %v2101
  %v2103 = vsub.f32 1.5, %v2102
  %v2104 = vmul.f32 %v2099, %v2103
  %vm2105 = vweird.f32 %v1873
  %vm2106 = vweird.f32 %v2099
  %vm2107 = vmor %vm2105, %vm2106
  %v2108 = vsel %vm2107, %v2099, %v2104
  %v2109 = vrsqrt.pop %v1874
  %v2110 = vmul.f32 %v2109, %v1874
  %v2111 = vmul.f32 %v2110, %v2109
  %v2112 = vmul.f32 0.5, %v2111
  %v2113 = vsub.f32 1.5, %v2112
  %v2114 = vmul.f32 %v2109, %v2113
  %vm2115 = vweird.f32 %v1874
  %vm2116 = vweird.f32 %v2109
  %vm2117 = vmor %vm2115, %vm2116
  %v2118 = vsel %vm2117, %v2109, %v2114
  %v2119 = vrsqrt.pop %v1875
  %v2120 = vmul.f32 %v2119, %v1875
  %v2121 = vmul.f32 %v2120, %v2119
  %v2122 = vmul.f32 0.5, %v2121
  %v2123 = vsub.f32 1.5, %v2122
  %v2124 = vmul.f32 %v2119, %v2123
  %vm2125 = vweird.f32 %v1875
  %vm2126 = vweird.f32 %v2119
  %vm2127 = vmor %vm2125, %vm2126
  %v2128 = vsel %vm2127, %v2119, %v2124
  %v2129 = vrsqrt.pop %v1876
  %v2130 = vmul.f32 %v2129, %v1876
  %v2131 = vmul.f32 %v2130, %v2129
  %v2132 = vmul.f32 0.5, %v2131
  %v2133 = vsub.f32 1.5, %v2132
  %v2134 = vmul.f32 %v2129, %v2133
  %vm2135 = vweird.f32 %v1876
  %vm2136 = vweird.f32 %v2129
  %vm2137 = vmor %vm2135, %vm2136
  %v2138 = vsel %vm2137, %v2129, %v2134
  %v2139 = vrsqrt.pop %v1877
  %v2140 = vmul.f32 %v2139, %v1877
  %v2141 = vmul.f32 %v2140, %v2139
  %v2142 = vmul.f32 0.5, %v2141
  %v2143 = vsub.f32 1.5, %v2142
  %v2144 = vmul.f32 %v2139, %v2143
  %vm2145 = vweird.f32 %v1877
  %vm2146 = vweird.f32 %v2139
  %vm2147 = vmor %vm2145, %vm2146
  %v2148 = vsel %vm2147, %v2139, %v2144
  %v2149 = vrsqrt.pop %v1878
  %v2150 = vmul.f32 %v2149, %v1878
  %v2151 = vmul.f32 %v2150, %v2149
  %v2152 = vmul.f32 0.5, %v2151
  %v2153 = vsub.f32 1.5, %v2152
  %v2154 = vmul.f32 %v2149, %v2153
  %vm2155 = vweird.f32 %v1878
  %vm2156 = vweird.f32 %v2149
  %vm2157 = vmor %vm2155, %vm2156
  %v2158 = vsel %vm2157, %v2149, %v2154
  %v2159 = vrsqrt.pop %v1879
  %v2160 = vmul.f32 %v2159, %v1879
  %v2161 = vmul.f32 %v2160, %v2159
  %v2162 = vmul.f32 0.5, %v2161
  %v2163 = vsub.f32 1.5, %v2162
  %v2164 = vmul.f32 %v2159, %v2163
  %vm2165 = vweird.f32 %v1879
  %vm2166 = vweird.f32 %v2159
  %vm2167 = vmor %vm2165, %vm2166
  %v2168 = vsel %vm2167, %v2159, %v2164
  %v2169 = vrsqrt.pop %v1880
  %v2170 = vmul.f32 %v2169, %v1880
  %v2171 = vmul.f32 %v2170, %v2169
  %v2172 = vmul.f32 0.5, %v2171
  %v2173 = vsub.f32 1.5, %v2172
  %v2174 = vmul.f32 %v2169, %v2173
  %vm2175 = vweird.f32 %v1880
  %vm2176 = vweird.f32 %v2169
  %vm2177 = vmor %vm2175, %vm2176
  %v2178 = vsel %vm2177, %v2169, %v2174
  %v2179 = vrsqrt.pop %v1881
  %v2180 = vmul.f32 %v2179, %v1881
  %v2181 = vmul.f32 %v2180, %v2179
  %v2182 = vmul.f32 0.5, %v2181
  %v2183 = vsub.f32 1.5, %v2182
  %v2184 = vmul.f32 %v2179, %v2183
  %vm2185 = vweird.f32 %v1881
  %vm2186 = vweird.f32 %v2179
  %vm2187 = vmor %vm2185, %vm2186
  %v2188 = vsel %vm2187, %v2179, %v2184
  %v2189 = vrsqrt.pop %v1882
  %v2190 = vmul.f32 %v2189, %v1882
  %v2191 = vmul.f32 %v2190, %v2189
  %v2192 = vmul.f32 0.5, %v2191
  %v2193 = vsub.f32 1.5, %v2192
  %v2194 = vmul.f32 %v2189, %v2193
  %vm2195 = vweird.f32 %v1882
  %vm2196 = vweird.f32 %v2189
  %vm2197 = vmor %vm2195, %vm2196
  %v2198 = vsel %vm2197, %v2189, %v2194
  %v2199 = vrsqrt.pop %v1883
  %v2200 = vmul.f32 %v2199, %v1883
  %v2201 = vmul.f32 %v2200, %v2199
  %v2202 = vmul.f32 0.5, %v2201
  %v2203 = vsub.f32 1.5, %v2202
  %v2204 = vmul.f32 %v2199, %v2203
  %vm2205 = vweird.f32 %v1883
  %vm2206 = vweird.f32 %v2199
  %vm2207 = vmor %vm2205, %vm2206
  %v2208 = vsel %vm2207, %v2199, %v2204
  %v2209 = vrsqrt.pop %v1884
  %v2210 = vmul.f32 %v2209, %v1884
  %v2211 = vmul.f32 %v2210, %v2209
  %v2212 = vmul.f32 0.5, %v2211
  %v2213 = vsub.f32 1.5, %v2212
  %v2214 = vmul.f32 %v2209, %v2213
  %vm2215 = vweird.f32 %v1884
  %vm2216 = vweird.f32 %v2209
  %vm2217 = vmor %vm2215, %vm2216
  %v2218 = vsel %vm2217, %v2209, %v2214
  %v2219 = vrsqrt.pop %v1885
  %v2220 = vmul.f32 %v2219, %v1885
  %v2221 = vmul.f32 %v2220, %v2219
  %v2222 = vmul.f32 0.5, %v2221
  %v2223 = vsub.f32 1.5, %v2222
  %v2224 = vmul.f32 %v2219, %v2223
  %vm2225 = vweird.f32 %v1885
  %vm2226 = vweird.f32 %v2219
  %vm2227 = vmor %vm2225, %vm2226
  %v2228 = vsel %vm2227, %v2219, %v2224
  %v2229 = vrsqrt.pop %v1886
  %v2230 = vmul.f32 %v2229, %v1886
  %v2231 = vmul.f32 %v2230, %v2229
  %v2232 = vmul.f32 0.5, %v2231
  %v2233 = vsub.f32 1.5, %v2232
  %v2234 = vmul.f32 %v2229, %v2233
  %vm2235 = vweird.f32 %v1886
  %vm2236 = vweird.f32 %v2229
  %vm2237 = vmor %vm2235, %vm2236
  %v2238 = vsel %vm2237, %v2229, %v2234
  %v2239 = vrsqrt.pop %v1887
  %v2240 = vmul.f32 %v2239, %v1887
  %v2241 = vmul.f32 %v2240, %v2239
  %v2242 = vmul.f32 0.5, %v2241
  %v2243 = vsub.f32 1.5, %v2242
  %v2244 = vmul.f32 %v2239, %v2243
  %vm2245 = vweird.f32 %v1887
  %vm2246 = vweird.f32 %v2239
  %vm2247 = vmor %vm2245, %vm2246
  %v2248 = vsel %vm2247, %v2239, %v2244
  %v2249 = vrsqrt.pop %v1888
  %v2250 = vmul.f32 %v2249, %v1888
  %v2251 = vmul.f32 %v2250, %v2249
  %v2252 = vmul.f32 0.5, %v2251
  %v2253 = vsub.f32 1.5, %v2252
  %v2254 = vmul.f32 %v2249, %v2253
  %vm2255 = vweird.f32 %v1888
  %vm2256 = vweird.f32 %v2249
  %vm2257 = vmor %vm2255, %vm2256
  %v2258 = vsel %vm2257, %v2249, %v2254
  %v2259 = vrsqrt.pop %v1889
  %v2260 = vmul.f32 %v2259, %v1889
  %v2261 = vmul.f32 %v2260, %v2259
  %v2262 = vmul.f32 0.5, %v2261
  %v2263 = vsub.f32 1.5, %v2262
  %v2264 = vmul.f32 %v2259, %v2263
  %vm2265 = vweird.f32 %v1889
  %vm2266 = vweird.f32 %v2259
  %vm2267 = vmor %vm2265, %vm2266
  %v2268 = vsel %vm2267, %v2259, %v2264
  %v2269 = vrsqrt.pop %v1890
  %v2270 = vmul.f32 %v2269, %v1890
  %v2271 = vmul.f32 %v2270, %v2269
  %v2272 = vmul.f32 0.5, %v2271
  %v2273 = vsub.f32 1.5, %v2272
  %v2274 = vmul.f32 %v2269, %v2273
  %vm2275 = vweird.f32 %v1890
  %vm2276 = vweird.f32 %v2269
  %vm2277 = vmor %vm2275, %vm2276
  %v2278 = vsel %vm2277, %v2269, %v2274
  %v2279 = vrsqrt.pop %v1891
  %v2280 = vmul.f32 %v2279, %v1891
  %v2281 = vmul.f32 %v2280, %v2279
  %v2282 = vmul.f32 0.5, %v2281
  %v2283 = vsub.f32 1.5, %v2282
  %v2284 = vmul.f32 %v2279, %v2283
  %vm2285 = vweird.f32 %v1891
  %vm2286 = vweird.f32 %v2279
  %vm2287 = vmor %vm2285, %vm2286
  %v2288 = vsel %vm2287, %v2279, %v2284
  %v2289 = vrsqrt.pop %v1892
  %v2290 = vmul.f32 %v2289, %v1892
  %v2291 = vmul.f32 %v2290, %v2289
  %v2292 = vmul.f32 0.5, %v2291
  %v2293 = vsub.f32 1.5, %v2292
  %v2294 = vmul.f32 %v2289, %v2293
  %vm2295 = vweird.f32 %v1892
  %vm2296 = vweird.f32 %v2289
  %vm2297 = vmor %vm2295, %vm2296
  %v2298 = vsel %vm2297, %v2289, %v2294
  %v2299 = vrsqrt.pop %v1893
  %v2300 = vmul.f32 %v2299, %v1893
  %v2301 = vmul.f32 %v2300, %v2299
  %v2302 = vmul.f32 0.5, %v2301
  %v2303 = vsub.f32 1.5, %v2302
  %v2304 = vmul.f32 %v2299, %v2303
  %vm2305 = vweird.f32 %v1893
  %vm2306 = vweird.f32 %v2299
  %vm2307 = vmor %vm2305, %vm2306
  %v2308 = vsel %vm2307, %v2299, %v2304
  %v2309 = vrsqrt.pop %v1894
  %v2310 = vmul.f32 %v2309, %v1894
  %v2311 = vmul.f32 %v2310, %v2309
  %v2312 = vmul.f32 0.5, %v2311
  %v2313 = vsub.f32 1.5, %v2312
  %v2314 = vmul.f32 %v2309, %v2313
  %vm2315 = vweird.f32 %v1894
  %vm2316 = vweird.f32 %v2309
  %vm2317 = vmor %vm2315, %vm2316
  %v2318 = vsel %vm2317, %v2309, %v2314
  %v2319 = vrsqrt.pop %v1895
  %v2320 = vmul.f32 %v2319, %v1895
  %v2321 = vmul.f32 %v2320, %v2319
  %v2322 = vmul.f32 0.5, %v2321
  %v2323 = vsub.f32 1.5, %v2322
  %v2324 = vmul.f32 %v2319, %v2323
  %vm2325 = vweird.f32 %v1895
  %vm2326 = vweird.f32 %v2319
  %vm2327 = vmor %vm2325, %vm2326
  %v2328 = vsel %vm2327, %v2319, %v2324
  %v2329 = vrsqrt.pop %v1896
  %v2330 = vmul.f32 %v2329, %v1896
  %v2331 = vmul.f32 %v2330, %v2329
  %v2332 = vmul.f32 0.5, %v2331
  %v2333 = vsub.f32 1.5, %v2332
  %v2334 = vmul.f32 %v2329, %v2333
  %vm2335 = vweird.f32 %v1896
  %vm2336 = vweird.f32 %v2329
  %vm2337 = vmor %vm2335, %vm2336
  %v2338 = vsel %vm2337, %v2329, %v2334
  %v2339 = vrsqrt.pop %v1897
  %v2340 = vmul.f32 %v2339, %v1897
  %v2341 = vmul.f32 %v2340, %v2339
  %v2342 = vmul.f32 0.5, %v2341
  %v2343 = vsub.f32 1.5, %v2342
  %v2344 = vmul.f32 %v2339, %v2343
  %vm2345 = vweird.f32 %v1897
  %vm2346 = vweird.f32 %v2339
  %vm2347 = vmor %vm2345, %vm2346
  %v2348 = vsel %vm2347, %v2339, %v2344
  %v2349 = vrsqrt.pop %v1898
  %v2350 = vmul.f32 %v2349, %v1898
  %v2351 = vmul.f32 %v2350, %v2349
  %v2352 = vmul.f32 0.5, %v2351
  %v2353 = vsub.f32 1.5, %v2352
  %v2354 = vmul.f32 %v2349, %v2353
  %vm2355 = vweird.f32 %v1898
  %vm2356 = vweird.f32 %v2349
  %vm2357 = vmor %vm2355, %vm2356
  %v2358 = vsel %vm2357, %v2349, %v2354
  %v2359 = vrsqrt.pop %v1899
  %v2360 = vmul.f32 %v2359, %v1899
  %v2361 = vmul.f32 %v2360, %v2359
  %v2362 = vmul.f32 0.5, %v2361
  %v2363 = vsub.f32 1.5, %v2362
  %v2364 = vmul.f32 %v2359, %v2363
  %vm2365 = vweird.f32 %v1899
  %vm2366 = vweird.f32 %v2359
  %vm2367 = vmor %vm2365, %vm2366
  %v2368 = vsel %vm2367, %v2359, %v2364
  %v2369 = vrsqrt.pop %v1900
  %v2370 = vmul.f32 %v2369, %v1900
  %v2371 = vmul.f32 %v2370, %v2369
  %v2372 = vmul.f32 0.5, %v2371
  %v2373 = vsub.f32 1.5, %v2372
  %v2374 = vmul.f32 %v2369, %v2373
  %vm2375 = vweird.f32 %v1900
  %vm2376 = vweird.f32 %v2369
  %vm2377 = vmor %vm2375, %vm2376
  %v2378 = vsel %vm2377, %v2369, %v2374
  %v2379 = vrsqrt.pop %v1901
  %v2380 = vmul.f32 %v2379, %v1901
  %v2381 = vmul.f32 %v2380, %v2379
  %v2382 = vmul.f32 0.5, %v2381
  %v2383 = vsub.f32 1.5, %v2382
  %v2384 = vmul.f32 %v2379, %v2383
  %vm2385 = vweird.f32 %v1901
  %vm2386 = vweird.f32 %v2379
  %vm2387 = vmor %vm2385, %vm2386
  %v2388 = vsel %vm2387, %v2379, %v2384
  %v2389 = vrsqrt.pop %v1902
  %v2390 = vmul.f32 %v2389, %v1902
  %v2391 = vmul.f32 %v2390, %v2389
  %v2392 = vmul.f32 0.5, %v2391
  %v2393 = vsub.f32 1.5, %v2392
  %v2394 = vmul.f32 %v2389, %v2393
  %vm2395 = vweird.f32 %v1902
  %vm2396 = vweird.f32 %v2389
  %vm2397 = vmor %vm2395, %vm2396
  %v2398 = vsel %vm2397, %v2389, %v2394
  %v2399 = vrsqrt.pop %v1903
  %v2400 = vmul.f32 %v2399, %v1903
  %v2401 = vmul.f32 %v2400, %v2399
  %v2402 = vmul.f32 0.5, %v2401
  %v2403 = vsub.f32 1.5, %v2402
  %v2404 = vmul.f32 %v2399, %v2403
  %vm2405 = vweird.f32 %v1903
  %vm2406 = vweird.f32 %v2399
  %vm2407 = vmor %vm2405, %vm2406
  %v2408 = vsel %vm2407, %v2399, %v2404
  %v2409 = vrsqrt.pop %v1904
  %v2410 = vmul.f32 %v2409, %v1904
  %v2411 = vmul.f32 %v2410, %v2409
  %v2412 = vmul.f32 0.5, %v2411
  %v2413 = vsub.f32 1.5, %v2412
  %v2414 = vmul.f32 %v2409, %v2413
  %vm2415 = vweird.f32 %v1904
  %vm2416 = vweird.f32 %v2409
  %vm2417 = vmor %vm2415, %vm2416
  %v2418 = vsel %vm2417, %v2409, %v2414
  %v2419 = vrsqrt.pop %v1905
  %v2420 = vmul.f32 %v2419, %v1905
  %v2421 = vmul.f32 %v2420, %v2419
  %v2422 = vmul.f32 0.5, %v2421
  %v2423 = vsub.f32 1.5, %v2422
  %v2424 = vmul.f32 %v2419, %v2423
  %vm2425 = vweird.f32 %v1905
  %vm2426 = vweird.f32 %v2419
  %vm2427 = vmor %vm2425, %vm2426
  %v2428 = vsel %vm2427, %v2419, %v2424
  %v2429 = vrsqrt.pop %v1906
  %v2430 = vmul.f32 %v2429, %v1906
  %v2431 = vmul.f32 %v2430, %v2429
  %v2432 = vmul.f32 0.5, %v2431
  %v2433 = vsub.f32 1.5, %v2432
  %v2434 = vmul.f32 %v2429, %v2433
  %vm2435 = vweird.f32 %v1906
  %vm2436 = vweird.f32 %v2429
  %vm2437 = vmor %vm2435, %vm2436
  %v2438 = vsel %vm2437, %v2429, %v2434
  %v2439 = vrsqrt.pop %v1907
  %v2440 = vmul.f32 %v2439, %v1907
  %v2441 = vmul.f32 %v2440, %v2439
  %v2442 = vmul.f32 0.5, %v2441
  %v2443 = vsub.f32 1.5, %v2442
  %v2444 = vmul.f32 %v2439, %v2443
  %vm2445 = vweird.f32 %v1907
  %vm2446 = vweird.f32 %v2439
  %vm2447 = vmor %vm2445, %vm2446
  %v2448 = vsel %vm2447, %v2439, %v2444
  %v2449 = vrsqrt.pop %v1908
  %v2450 = vmul.f32 %v2449, %v1908
  %v2451 = vmul.f32 %v2450, %v2449
  %v2452 = vmul.f32 0.5, %v2451
  %v2453 = vsub.f32 1.5, %v2452
  %v2454 = vmul.f32 %v2449, %v2453
  %vm2455 = vweird.f32 %v1908
  %vm2456 = vweird.f32 %v2449
  %vm2457 = vmor %vm2455, %vm2456
  %v2458 = vsel %vm2457, %v2449, %v2454
  %v2459 = vrsqrt.pop %v1909
  %v2460 = vmul.f32 %v2459, %v1909
  %v2461 = vmul.f32 %v2460, %v2459
  %v2462 = vmul.f32 0.5, %v2461
  %v2463 = vsub.f32 1.5, %v2462
  %v2464 = vmul.f32 %v2459, %v2463
  %vm2465 = vweird.f32 %v1909
  %vm2466 = vweird.f32 %v2459
  %vm2467 = vmor %vm2465, %vm2466
  %v2468 = vsel %vm2467, %v2459, %v2464
  %v2469 = vrsqrt.pop %v1910
  %v2470 = vmul.f32 %v2469, %v1910
  %v2471 = vmul.f32 %v2470, %v2469
  %v2472 = vmul.f32 0.5, %v2471
  %v2473 = vsub.f32 1.5, %v2472
  %v2474 = vmul.f32 %v2469, %v2473
  %vm2475 = vweird.f32 %v1910
  %vm2476 = vweird.f32 %v2469
  %vm2477 = vmor %vm2475, %vm2476
  %v2478 = vsel %vm2477, %v2469, %v2474
  %v2479 = vrsqrt.pop %v1911
  %v2480 = vmul.f32 %v2479, %v1911
  %v2481 = vmul.f32 %v2480, %v2479
  %v2482 = vmul.f32 0.5, %v2481
  %v2483 = vsub.f32 1.5, %v2482
  %v2484 = vmul.f32 %v2479, %v2483
  %vm2485 = vweird.f32 %v1911
  %vm2486 = vweird.f32 %v2479
  %vm2487 = vmor %vm2485, %vm2486
  %v2488 = vsel %vm2487, %v2479, %v2484
  %v2489 = vrsqrt.pop %v1912
  %v2490 = vmul.f32 %v2489, %v1912
  %v2491 = vmul.f32 %v2490, %v2489
  %v2492 = vmul.f32 0.5, %v2491
  %v2493 = vsub.f32 1.5, %v2492
  %v2494 = vmul.f32 %v2489, %v2493
  %vm2495 = vweird.f32 %v1912
  %vm2496 = vweird.f32 %v2489
  %vm2497 = vmor %vm2495, %vm2496
  %v2498 = vsel %vm2497, %v2489, %v2494
  %v2499 = vrsqrt.pop %v1913
  %v2500 = vmul.f32 %v2499, %v1913
  %v2501 = vmul.f32 %v2500, %v2499
  %v2502 = vmul.f32 0.5, %v2501
  %v2503 = vsub.f32 1.5, %v2502
  %v2504 = vmul.f32 %v2499, %v2503
  %vm2505 = vweird.f32 %v1913
  %vm2506 = vweird.f32 %v2499
  %vm2507 = vmor %vm2505, %vm2506
  %v2508 = vsel %vm2507, %v2499, %v2504
  %v2509 = vrsqrt.pop %v1914
  %v2510 = vmul.f32 %v2509, %v1914
  %v2511 = vmul.f32 %v2510, %v2509
  %v2512 = vmul.f32 0.5, %v2511
  %v2513 = vsub.f32 1.5, %v2512
  %v2514 = vmul.f32 %v2509, %v2513
  %vm2515 = vweird.f32 %v1914
  %vm2516 = vweird.f32 %v2509
  %vm2517 = vmor %vm2515, %vm2516
  %v2518 = vsel %vm2517, %v2509, %v2514
  %v2519 = vrsqrt.pop %v1915
  %v2520 = vmul.f32 %v2519, %v1915
  %v2521 = vmul.f32 %v2520, %v2519
  %v2522 = vmul.f32 0.5, %v2521
  %v2523 = vsub.f32 1.5, %v2522
  %v2524 = vmul.f32 %v2519, %v2523
  %vm2525 = vweird.f32 %v1915
  %vm2526 = vweird.f32 %v2519
  %vm2527 = vmor %vm2525, %vm2526
  %v2528 = vsel %vm2527, %v2519, %v2524
  %v2529 = vrsqrt.pop %v1916
  %v2530 = vmul.f32 %v2529, %v1916
  %v2531 = vmul.f32 %v2530, %v2529
  %v2532 = vmul.f32 0.5, %v2531
  %v2533 = vsub.f32 1.5, %v2532
  %v2534 = vmul.f32 %v2529, %v2533
  %vm2535 = vweird.f32 %v1916
  %vm2536 = vweird.f32 %v2529
  %vm2537 = vmor %vm2535, %vm2536
  %v2538 = vsel %vm2537, %v2529, %v2534
  %v2539 = vrsqrt.pop %v1917
  %v2540 = vmul.f32 %v2539, %v1917
  %v2541 = vmul.f32 %v2540, %v2539
  %v2542 = vmul.f32 0.5, %v2541
  %v2543 = vsub.f32 1.5, %v2542
  %v2544 = vmul.f32 %v2539, %v2543
  %vm2545 = vweird.f32 %v1917
  %vm2546 = vweird.f32 %v2539
  %vm2547 = vmor %vm2545, %vm2546
  %v2548 = vsel %vm2547, %v2539, %v2544
  %v2549 = vrsqrt.pop %v1918
  %v2550 = vmul.f32 %v2549, %v1918
  %v2551 = vmul.f32 %v2550, %v2549
  %v2552 = vmul.f32 0.5, %v2551
  %v2553 = vsub.f32 1.5, %v2552
  %v2554 = vmul.f32 %v2549, %v2553
  %vm2555 = vweird.f32 %v1918
  %vm2556 = vweird.f32 %v2549
  %vm2557 = vmor %vm2555, %vm2556
  %v2558 = vsel %vm2557, %v2549, %v2554
  %v2559 = vmul.f32 %v1471, %v1928
  %v2560 = vmul.f32 %v1472, %v1938
  %v2561 = vmul.f32 %v1473, %v1948
  %v2562 = vmul.f32 %v1474, %v1958
  %v2563 = vmul.f32 %v1475, %v1968
  %v2564 = vmul.f32 %v1476, %v1978
  %v2565 = vmul.f32 %v1477, %v1988
  %v2566 = vmul.f32 %v1478, %v1998
  %v2567 = vmul.f32 %v1479, %v2008
  %v2568 = vmul.f32 %v1480, %v2018
  %v2569 = vmul.f32 %v1481, %v2028
  %v2570 = vmul.f32 %v1482, %v2038
  %v2571 = vmul.f32 %v1483, %v2048
  %v2572 = vmul.f32 %v1484, %v2058
  %v2573 = vmul.f32 %v1485, %v2068
  %v2574 = vmul.f32 %v1486, %v2078
  %v2575 = vmul.f32 %v1487, %v2088
  %v2576 = vmul.f32 %v1488, %v2098
  %v2577 = vmul.f32 %v1489, %v2108
  %v2578 = vmul.f32 %v1490, %v2118
  %v2579 = vmul.f32 %v1491, %v2128
  %v2580 = vmul.f32 %v1492, %v2138
  %v2581 = vmul.f32 %v1493, %v2148
  %v2582 = vmul.f32 %v1494, %v2158
  %v2583 = vmul.f32 %v1495, %v2168
  %v2584 = vmul.f32 %v1496, %v2178
  %v2585 = vmul.f32 %v1497, %v2188
  %v2586 = vmul.f32 %v1498, %v2198
  %v2587 = vmul.f32 %v1499, %v2208
  %v2588 = vmul.f32 %v1500, %v2218
  %v2589 = vmul.f32 %v1501, %v2228
  %v2590 = vmul.f32 %v1502, %v2238
  %v2591 = vmul.f32 %v1503, %v2248
  %v2592 = vmul.f32 %v1504, %v2258
  %v2593 = vmul.f32 %v1505, %v2268
  %v2594 = vmul.f32 %v1506, %v2278
  %v2595 = vmul.f32 %v1507, %v2288
  %v2596 = vmul.f32 %v1508, %v2298
  %v2597 = vmul.f32 %v1509, %v2308
  %v2598 = vmul.f32 %v1510, %v2318
  %v2599 = vmul.f32 %v1511, %v2328
  %v2600 = vmul.f32 %v1512, %v2338
  %v2601 = vmul.f32 %v1513, %v2348
  %v2602 = vmul.f32 %v1514, %v2358
  %v2603 = vmul.f32 %v1515, %v2368
  %v2604 = vmul.f32 %v1516, %v2378
  %v2605 = vmul.f32 %v1517, %v2388
  %v2606 = vmul.f32 %v1518, %v2398
  %v2607 = vmul.f32 %v1519, %v2408
  %v2608 = vmul.f32 %v1520, %v2418
  %v2609 = vmul.f32 %v1521, %v2428
  %v2610 = vmul.f32 %v1522, %v2438
  %v2611 = vmul.f32 %v1523, %v2448
  %v2612 = vmul.f32 %v1524, %v2458
  %v2613 = vmul.f32 %v1525, %v2468
  %v2614 = vmul.f32 %v1526, %v2478
  %v2615 = vmul.f32 %v1527, %v2488
  %v2616 = vmul.f32 %v1528, %v2498
  %v2617 = vmul.f32 %v1529, %v2508
  %v2618 = vmul.f32 %v1530, %v2518
  %v2619 = vmul.f32 %v1531, %v2528
  %v2620 = vmul.f32 %v1532, %v2538
  %v2621 = vmul.f32 %v1533, %v2548
  %v2622 = vmul.f32 %v1534, %v2558
  %v2623 = vld [vmem:[%s7] sm:$0x1]
  %v2625 = vperm.slane %v2623, 0
  %v2627 = vmul.f32 %v2559, %v2625
  %v2628 = vmul.f32 %v2560, %v2625
  %v2629 = vmul.f32 %v2561, %v2625
  %v2630 = vmul.f32 %v2562, %v2625
  %v2631 = vmul.f32 %v2563, %v2625
  %v2632 = vmul.f32 %v2564, %v2625
  %v2633 = vmul.f32 %v2565, %v2625
  %v2634 = vmul.f32 %v2566, %v2625
  %v2635 = vmul.f32 %v2567, %v2625
  %v2636 = vmul.f32 %v2568, %v2625
  %v2637 = vmul.f32 %v2569, %v2625
  %v2638 = vmul.f32 %v2570, %v2625
  %v2639 = vmul.f32 %v2571, %v2625
  %v2640 = vmul.f32 %v2572, %v2625
  %v2641 = vmul.f32 %v2573, %v2625
  %v2642 = vmul.f32 %v2574, %v2625
  %v2643 = vmul.f32 %v2575, %v2625
  %v2644 = vmul.f32 %v2576, %v2625
  %v2645 = vmul.f32 %v2577, %v2625
  %v2646 = vmul.f32 %v2578, %v2625
  %v2647 = vmul.f32 %v2579, %v2625
  %v2648 = vmul.f32 %v2580, %v2625
  %v2649 = vmul.f32 %v2581, %v2625
  %v2650 = vmul.f32 %v2582, %v2625
  %v2651 = vmul.f32 %v2583, %v2625
  %v2652 = vmul.f32 %v2584, %v2625
  %v2653 = vmul.f32 %v2585, %v2625
  %v2654 = vmul.f32 %v2586, %v2625
  %v2655 = vmul.f32 %v2587, %v2625
  %v2656 = vmul.f32 %v2588, %v2625
  %v2657 = vmul.f32 %v2589, %v2625
  %v2658 = vmul.f32 %v2590, %v2625
  %v2659 = vmul.f32 %v2591, %v2625
  %v2660 = vmul.f32 %v2592, %v2625
  %v2661 = vmul.f32 %v2593, %v2625
  %v2662 = vmul.f32 %v2594, %v2625
  %v2663 = vmul.f32 %v2595, %v2625
  %v2664 = vmul.f32 %v2596, %v2625
  %v2665 = vmul.f32 %v2597, %v2625
  %v2666 = vmul.f32 %v2598, %v2625
  %v2667 = vmul.f32 %v2599, %v2625
  %v2668 = vmul.f32 %v2600, %v2625
  %v2669 = vmul.f32 %v2601, %v2625
  %v2670 = vmul.f32 %v2602, %v2625
  %v2671 = vmul.f32 %v2603, %v2625
  %v2672 = vmul.f32 %v2604, %v2625
  %v2673 = vmul.f32 %v2605, %v2625
  %v2674 = vmul.f32 %v2606, %v2625
  %v2675 = vmul.f32 %v2607, %v2625
  %v2676 = vmul.f32 %v2608, %v2625
  %v2677 = vmul.f32 %v2609, %v2625
  %v2678 = vmul.f32 %v2610, %v2625
  %v2679 = vmul.f32 %v2611, %v2625
  %v2680 = vmul.f32 %v2612, %v2625
  %v2681 = vmul.f32 %v2613, %v2625
  %v2682 = vmul.f32 %v2614, %v2625
  %v2683 = vmul.f32 %v2615, %v2625
  %v2684 = vmul.f32 %v2616, %v2625
  %v2685 = vmul.f32 %v2617, %v2625
  %v2686 = vmul.f32 %v2618, %v2625
  %v2687 = vmul.f32 %v2619, %v2625
  %v2688 = vmul.f32 %v2620, %v2625
  %v2689 = vmul.f32 %v2621, %v2625
  %v2690 = vmul.f32 %v2622, %v2625
  %v2691 = vld [vmem:[%s8] sm:$0x1]
  %v2693 = vperm.slane %v2691, 0
  %v2695 = vadd.f32 %v2627, %v2693
  %v2696 = vadd.f32 %v2628, %v2693
  %v2697 = vadd.f32 %v2629, %v2693
  %v2698 = vadd.f32 %v2630, %v2693
  %v2699 = vadd.f32 %v2631, %v2693
  %v2700 = vadd.f32 %v2632, %v2693
  %v2701 = vadd.f32 %v2633, %v2693
  %v2702 = vadd.f32 %v2634, %v2693
  %v2703 = vadd.f32 %v2635, %v2693
  %v2704 = vadd.f32 %v2636, %v2693
  %v2705 = vadd.f32 %v2637, %v2693
  %v2706 = vadd.f32 %v2638, %v2693
  %v2707 = vadd.f32 %v2639, %v2693
  %v2708 = vadd.f32 %v2640, %v2693
  %v2709 = vadd.f32 %v2641, %v2693
  %v2710 = vadd.f32 %v2642, %v2693
  %v2711 = vadd.f32 %v2643, %v2693
  %v2712 = vadd.f32 %v2644, %v2693
  %v2713 = vadd.f32 %v2645, %v2693
  %v2714 = vadd.f32 %v2646, %v2693
  %v2715 = vadd.f32 %v2647, %v2693
  %v2716 = vadd.f32 %v2648, %v2693
  %v2717 = vadd.f32 %v2649, %v2693
  %v2718 = vadd.f32 %v2650, %v2693
  %v2719 = vadd.f32 %v2651, %v2693
  %v2720 = vadd.f32 %v2652, %v2693
  %v2721 = vadd.f32 %v2653, %v2693
  %v2722 = vadd.f32 %v2654, %v2693
  %v2723 = vadd.f32 %v2655, %v2693
  %v2724 = vadd.f32 %v2656, %v2693
  %v2725 = vadd.f32 %v2657, %v2693
  %v2726 = vadd.f32 %v2658, %v2693
  %v2727 = vadd.f32 %v2659, %v2693
  %v2728 = vadd.f32 %v2660, %v2693
  %v2729 = vadd.f32 %v2661, %v2693
  %v2730 = vadd.f32 %v2662, %v2693
  %v2731 = vadd.f32 %v2663, %v2693
  %v2732 = vadd.f32 %v2664, %v2693
  %v2733 = vadd.f32 %v2665, %v2693
  %v2734 = vadd.f32 %v2666, %v2693
  %v2735 = vadd.f32 %v2667, %v2693
  %v2736 = vadd.f32 %v2668, %v2693
  %v2737 = vadd.f32 %v2669, %v2693
  %v2738 = vadd.f32 %v2670, %v2693
  %v2739 = vadd.f32 %v2671, %v2693
  %v2740 = vadd.f32 %v2672, %v2693
  %v2741 = vadd.f32 %v2673, %v2693
  %v2742 = vadd.f32 %v2674, %v2693
  %v2743 = vadd.f32 %v2675, %v2693
  %v2744 = vadd.f32 %v2676, %v2693
  %v2745 = vadd.f32 %v2677, %v2693
  %v2746 = vadd.f32 %v2678, %v2693
  %v2747 = vadd.f32 %v2679, %v2693
  %v2748 = vadd.f32 %v2680, %v2693
  %v2749 = vadd.f32 %v2681, %v2693
  %v2750 = vadd.f32 %v2682, %v2693
  %v2751 = vadd.f32 %v2683, %v2693
  %v2752 = vadd.f32 %v2684, %v2693
  %v2753 = vadd.f32 %v2685, %v2693
  %v2754 = vadd.f32 %v2686, %v2693
  %v2755 = vadd.f32 %v2687, %v2693
  %v2756 = vadd.f32 %v2688, %v2693
  %v2757 = vadd.f32 %v2689, %v2693
  %v2758 = vadd.f32 %v2690, %v2693
  %2759 = vst.msk [vmem:[%s9] sm:$0xff] %vm333, %v2695
  %2760 = vst.msk [vmem:[%s9 + $0x8] sm:$0xff] %vm333, %v2696
  %2761 = vst.msk [vmem:[%s9 + $0x10] sm:$0xff] %vm333, %v2697
  %2762 = vst.msk [vmem:[%s9 + $0x18] sm:$0xff] %vm333, %v2698
  %2763 = vst.msk [vmem:[%s9 + $0x20] sm:$0xff] %vm333, %v2699
  %2764 = vst.msk [vmem:[%s9 + $0x28] sm:$0xff] %vm333, %v2700
  %2765 = vst.msk [vmem:[%s9 + $0x30] sm:$0xff] %vm333, %v2701
  %2766 = vst.msk [vmem:[%s9 + $0x38] sm:$0xff] %vm333, %v2702
  %2767 = vst.msk [vmem:[%s9 + $0x40] sm:$0xff] %vm333, %v2703
  %2768 = vst.msk [vmem:[%s9 + $0x48] sm:$0xff] %vm333, %v2704
  %2769 = vst.msk [vmem:[%s9 + $0x50] sm:$0xff] %vm333, %v2705
  %2770 = vst.msk [vmem:[%s9 + $0x58] sm:$0xff] %vm333, %v2706
  %2771 = vst.msk [vmem:[%s9 + $0x60] sm:$0xff] %vm333, %v2707
  %2772 = vst.msk [vmem:[%s9 + $0x68] sm:$0xff] %vm333, %v2708
  %2773 = vst.msk [vmem:[%s9 + $0x70] sm:$0xff] %vm333, %v2709
  %2774 = vst.msk [vmem:[%s9 + $0x78] sm:$0xff] %vm333, %v2710
  %2775 = vst.msk [vmem:[%s9 + $0x80] sm:$0xff] %vm333, %v2711
  %2776 = vst.msk [vmem:[%s9 + $0x88] sm:$0xff] %vm333, %v2712
  %2777 = vst.msk [vmem:[%s9 + $0x90] sm:$0xff] %vm333, %v2713
  %2778 = vst.msk [vmem:[%s9 + $0x98] sm:$0xff] %vm333, %v2714
  %2779 = vst.msk [vmem:[%s9 + $0xa0] sm:$0xff] %vm333, %v2715
  %2780 = vst.msk [vmem:[%s9 + $0xa8] sm:$0xff] %vm333, %v2716
  %2781 = vst.msk [vmem:[%s9 + $0xb0] sm:$0xff] %vm333, %v2717
  %2782 = vst.msk [vmem:[%s9 + $0xb8] sm:$0xff] %vm333, %v2718
  %2783 = vst.msk [vmem:[%s9 + $0xc0] sm:$0xff] %vm333, %v2719
  %2784 = vst.msk [vmem:[%s9 + $0xc8] sm:$0xff] %vm333, %v2720
  %2785 = vst.msk [vmem:[%s9 + $0xd0] sm:$0xff] %vm333, %v2721
  %2786 = vst.msk [vmem:[%s9 + $0xd8] sm:$0xff] %vm333, %v2722
  %2787 = vst.msk [vmem:[%s9 + $0xe0] sm:$0xff] %vm333, %v2723
  %2788 = vst.msk [vmem:[%s9 + $0xe8] sm:$0xff] %vm333, %v2724
  %2789 = vst.msk [vmem:[%s9 + $0xf0] sm:$0xff] %vm333, %v2725
  %2790 = vst.msk [vmem:[%s9 + $0xf8] sm:$0xff] %vm333, %v2726
  %2791 = vst.msk [vmem:[%s9 + $0x100] sm:$0xff] %vm333, %v2727
  %2792 = vst.msk [vmem:[%s9 + $0x108] sm:$0xff] %vm333, %v2728
  %2793 = vst.msk [vmem:[%s9 + $0x110] sm:$0xff] %vm333, %v2729
  %2794 = vst.msk [vmem:[%s9 + $0x118] sm:$0xff] %vm333, %v2730
  %2795 = vst.msk [vmem:[%s9 + $0x120] sm:$0xff] %vm333, %v2731
  %2796 = vst.msk [vmem:[%s9 + $0x128] sm:$0xff] %vm333, %v2732
  %2797 = vst.msk [vmem:[%s9 + $0x130] sm:$0xff] %vm333, %v2733
  %2798 = vst.msk [vmem:[%s9 + $0x138] sm:$0xff] %vm333, %v2734
  %2799 = vst.msk [vmem:[%s9 + $0x140] sm:$0xff] %vm333, %v2735
  %2800 = vst.msk [vmem:[%s9 + $0x148] sm:$0xff] %vm333, %v2736
  %2801 = vst.msk [vmem:[%s9 + $0x150] sm:$0xff] %vm333, %v2737
  %2802 = vst.msk [vmem:[%s9 + $0x158] sm:$0xff] %vm333, %v2738
  %2803 = vst.msk [vmem:[%s9 + $0x160] sm:$0xff] %vm333, %v2739
  %2804 = vst.msk [vmem:[%s9 + $0x168] sm:$0xff] %vm333, %v2740
  %2805 = vst.msk [vmem:[%s9 + $0x170] sm:$0xff] %vm333, %v2741
  %2806 = vst.msk [vmem:[%s9 + $0x178] sm:$0xff] %vm333, %v2742
  %2807 = vst.msk [vmem:[%s9 + $0x180] sm:$0xff] %vm333, %v2743
  %2808 = vst.msk [vmem:[%s9 + $0x188] sm:$0xff] %vm333, %v2744
  %2809 = vst.msk [vmem:[%s9 + $0x190] sm:$0xff] %vm333, %v2745
  %2810 = vst.msk [vmem:[%s9 + $0x198] sm:$0xff] %vm333, %v2746
  %2811 = vst.msk [vmem:[%s9 + $0x1a0] sm:$0xff] %vm333, %v2747
  %2812 = vst.msk [vmem:[%s9 + $0x1a8] sm:$0xff] %vm333, %v2748
  %2813 = vst.msk [vmem:[%s9 + $0x1b0] sm:$0xff] %vm333, %v2749
  %2814 = vst.msk [vmem:[%s9 + $0x1b8] sm:$0xff] %vm333, %v2750
  %2815 = vst.msk [vmem:[%s9 + $0x1c0] sm:$0xff] %vm333, %v2751
  %2816 = vst.msk [vmem:[%s9 + $0x1c8] sm:$0xff] %vm333, %v2752
  %2817 = vst.msk [vmem:[%s9 + $0x1d0] sm:$0xff] %vm333, %v2753
  %2818 = vst.msk [vmem:[%s9 + $0x1d8] sm:$0xff] %vm333, %v2754
  %2819 = vst.msk [vmem:[%s9 + $0x1e0] sm:$0xff] %vm333, %v2755
  %2820 = vst.msk [vmem:[%s9 + $0x1e8] sm:$0xff] %vm333, %v2756
  %2821 = vst.msk [vmem:[%s9 + $0x1f0] sm:$0xff] %vm333, %v2757
  %2822 = vst.msk [vmem:[%s9 + $0x1f8] sm:$0xff] %vm333, %v2758
  // Predicated region
  $region38: #{mlp_forward.1} parent=0 // pred_check
    _
  $region39: #{mlp_forward.1} parent=0 // pred_check_branch
    %2824 = sbr.rel (0) target = $region41
  $region40: #{mlp_forward.1} parent=0 // pred_region
    _
  $region41: #{mlp_forward.1} parent=0 // pred_fallthru
    _
  // Predicated region
  $region42: #{mlp_forward.1} parent=0 // pred_check
    _
  $region43: #{mlp_forward.1} parent=0 // pred_check_branch
    %2826 = sbr.rel (0) target = $region45
  $region44: #{mlp_forward.1} parent=0 // pred_region
    _
  $region45: #{mlp_forward.1} parent=0 // pred_fallthru
    _

</llo_original>
